<compile_context>
chip_gen: v7x
topology: tpu7x:2x2x1
jax: 0.10.0
libtpu: 0.0.40
codegen_flags: <defaults>
</compile_context>

<pallas_src>
import jax
import jax.numpy as jnp
from jax import lax
from jax.experimental import pallas as pl
from jax.experimental.pallas import tpu as pltpu


def resblock_kernel(x_ref, w1_ref, w2_ref, fc1w_ref, fc1b_ref, fc2w_ref,
                    fc2b_ref, gmean_ref, psel_ref, gbc_ref, o_ref):
    # Block shapes (per grid step):
    #   x_ref/o_ref : (1, C, bb*L)  f32   -- bb batch elements, lane-dense
    #   w1/w2       : (3, C, C)     cdt   -- tap t weight = W_torch[:, :, t]
    #   fc1w (H,C), fc1b (H,1), fc2w (C,H), fc2b (C,1)        f32
    #   gmean (bb*L, bb) f32 : 1/L at (j, j//L)   -> per-element mean
    #   psel  (bb*L, bb) f32 : 1   at (b*L, b)    -> per-element max pick
    #   gbc   (bb, bb*L) f32 : 1   at (b, b*L+l)  -> broadcast weights over L
    C = x_ref.shape[1]
    BBL = x_ref.shape[2]
    bb = gmean_ref.shape[1]
    L = BBL // bb
    cdt = w1_ref.dtype                      # compute dtype of the conv matmuls

    # Element-boundary masks for the +-1 shifts (tiny, recomputed per step).
    pos = lax.broadcasted_iota(jnp.int32, (1, BBL), 1) % L
    keep_prev = (pos != 0).astype(cdt)
    keep_next = (pos != (L - 1)).astype(cdt)
    zcol = jnp.zeros((C, 1), cdt)

    def conv3(z, w_ref):
        # z: (C, bb*L) in cdt -> (C, bb*L) f32; 3 accumulated MXU matmuls.
        zprev = jnp.concatenate([zcol, z[:, :BBL - 1]], axis=1) * keep_prev
        znext = jnp.concatenate([z[:, 1:], zcol], axis=1) * keep_next
        h = jnp.dot(w_ref[1], z, preferred_element_type=jnp.float32)
        h = h + jnp.dot(w_ref[0], zprev, preferred_element_type=jnp.float32)
        h = h + jnp.dot(w_ref[2], znext, preferred_element_type=jnp.float32)
        return h

    x = x_ref[0]                                             # (C, bb*L) f32
    h1 = jnp.maximum(conv3(x.astype(cdt), w1_ref), 0.0)      # (C, bb*L) f32
    h2 = conv3(h1.astype(cdt), w2_ref)                       # (C, bb*L) f32

    # ---- channel attention, batched over all bb elements of the block ----
    avg = jnp.dot(h2, gmean_ref[...], preferred_element_type=jnp.float32)  # (C, bb)

    # Per-element max: forward shift/max tree (window grows to L), then pick
    # column b*L of each element.  Tail pad is large-but-finite negative and
    # bf16-representable, so the 0 entries of psel never meet an inf
    # (0 * inf would be NaN in the matmul).
    v = h2
    win = 1
    while win < L:
        s = min(win, L - win)
        tail = jnp.full((C, s), -3.0e38, dtype=v.dtype)
        v = jnp.maximum(v, jnp.concatenate([v[:, s:], tail], axis=1))
        win += s
    mx = jnp.dot(v, psel_ref[...], preferred_element_type=jnp.float32)      # (C, bb)

    fc1w = fc1w_ref[...]
    fc1b = fc1b_ref[...]
    a_avg = jnp.maximum(
        jnp.dot(fc1w, avg, preferred_element_type=jnp.float32) + fc1b, 0.0)  # (H, bb)
    a_max = jnp.maximum(
        jnp.dot(fc1w, mx, preferred_element_type=jnp.float32) + fc1b, 0.0)   # (H, bb)
    # Shared fc2 bias appears in both MLP branches -> 2 * fc2b after summing.
    logits = (jnp.dot(fc2w_ref[...], a_avg + a_max,
                      preferred_element_type=jnp.float32)
              + 2.0 * fc2b_ref[...])                                         # (C, bb)
    w_ca = jax.nn.sigmoid(logits)                                            # (C, bb)
    w_full = jnp.dot(w_ca, gbc_ref[...],
                     preferred_element_type=jnp.float32)                     # (C, bb*L)

    # Residual add + final ReLU; one lane-dense full-tile store.
    o_ref[0] = jnp.maximum(w_full * h2 + x, 0.0)


def resblock_pallas(x_ncl, Wc1, Wc2, fc1_w, fc1_b, fc2_w, fc2_b,
                    *, compute_dtype=jnp.bfloat16, batch_block=None):
    """x_ncl: (N, C, L) float32; Wc*: torch Conv1d weights (C, C, 3);
    fc*_w / fc*_b: torch Linear params of the ChannelAttention MLP."""
    N, C, L = x_ncl.shape
    H = fc1_w.shape[0]

    if batch_block is None:
        bb = -(-1024 // L)                                   # >= ~1024 lanes of matmul width/step
        vmem_cap = max(1, (12 << 20) // (12 * C * L * 4))    # keep live f32 slabs ~<= 12 MiB
        bb = max(1, min(bb, vmem_cap, 128))
        bb = min(bb, max(1, -(-N // 2)))                     # >= 2 grid steps when N >= 2 (v7x 2 TCs)
    else:
        bb = max(1, min(int(batch_block), N))
    G = pl.cdiv(N, bb)
    N_pad = G * bb
    BBL = bb * L

    xf = x_ncl.astype(jnp.float32)
    if N_pad != N:
        xf = jnp.pad(xf, ((0, N_pad - N), (0, 0), (0, 0)))   # zero pad: no garbage compute
    # (N_pad, C, L) -> (G, C, bb*L): column j of a slab is element j//L, position j%L.
    x_rs = xf.reshape(G, bb, C, L).transpose(0, 2, 1, 3).reshape(G, C, BBL)

    # Conv taps as (3, C, C): w[t] = W_torch[:, :, t].
    w1_k = jnp.transpose(Wc1, (2, 0, 1)).astype(compute_dtype)
    w2_k = jnp.transpose(Wc2, (2, 0, 1)).astype(compute_dtype)
    fc1w_k = fc1_w.astype(jnp.float32)                       # (H, C)
    fc2w_k = fc2_w.astype(jnp.float32)                       # (C, H)
    fc1b_k = fc1_b.reshape(H, 1).astype(jnp.float32)
    fc2b_k = fc2_b.reshape(C, 1).astype(jnp.float32)

    # Constant group matrices for the batched channel attention.
    j = jnp.arange(BBL)
    g = jnp.arange(bb)
    member = (j[:, None] // L) == g[None, :]
    g_mean = member.astype(jnp.float32) / float(L)           # (BBL, bb)
    p_sel = (j[:, None] == g[None, :] * L).astype(jnp.float32)  # (BBL, bb)
    g_bcast = jnp.transpose(member).astype(jnp.float32)      # (bb, BBL)

    itemsize = jnp.dtype(compute_dtype).itemsize
    conv_flops = 2 * (3 * 2 * C * C * BBL)                   # two convs, three taps each
    attn_flops = 4 * C * BBL * bb + 2 * C * bb * BBL + 8 * H * C * bb
    cost = pl.CostEstimate(
        flops=int(G * (conv_flops + attn_flops)),
        transcendentals=int(N_pad * C),
        bytes_accessed=int(2 * N_pad * C * L * 4
                           + 2 * 3 * C * C * itemsize
                           + (2 * H * C + H + C) * 4
                           + 3 * BBL * bb * 4))

    out_rs = pl.pallas_call(
        resblock_kernel,
        out_shape=jax.ShapeDtypeStruct((G, C, BBL), jnp.float32),
        grid_spec=pltpu.PrefetchScalarGridSpec(
            num_scalar_prefetch=0,
            grid=(G,),
            in_specs=[
                pl.BlockSpec((1, C, BBL), lambda n: (n, 0, 0)),
                pl.BlockSpec((3, C, C), lambda n: (0, 0, 0)),
                pl.BlockSpec((3, C, C), lambda n: (0, 0, 0)),
                pl.BlockSpec((H, C), lambda n: (0, 0)),
                pl.BlockSpec((H, 1), lambda n: (0, 0)),
                pl.BlockSpec((C, H), lambda n: (0, 0)),
                pl.BlockSpec((C, 1), lambda n: (0, 0)),
                pl.BlockSpec((BBL, bb), lambda n: (0, 0)),
                pl.BlockSpec((BBL, bb), lambda n: (0, 0)),
                pl.BlockSpec((bb, BBL), lambda n: (0, 0)),
            ],
            out_specs=pl.BlockSpec((1, C, BBL), lambda n: (n, 0, 0)),
        ),
        compiler_params=pltpu.CompilerParams(
            dimension_semantics=("parallel",),
            vmem_limit_bytes=48 * 1024 * 1024),
        cost_estimate=cost,
    )(x_rs, w1_k, w2_k, fc1w_k, fc1b_k, fc2w_k, fc2b_k, g_mean, p_sel, g_bcast)

    out = (out_rs.reshape(G, C, bb, L).transpose(0, 2, 1, 3)
           .reshape(N_pad, C, L))
    return out[:N]


def resblock_ref(x_ncl, Wc1, Wc2, fc1_w, fc1_b, fc2_w, fc2_b):
    """Pure-JAX reference mirroring the PyTorch forward exactly (f32)."""
    dn = ("NCH", "OIH", "NCH")
    conv = lambda v, w: lax.conv_general_dilated(
        v, w, window_strides=(1,), padding=((1, 1),), dimension_numbers=dn)
    h1 = jnp.maximum(conv(x_ncl, Wc1), 0.0)
    h2 = conv(h1, Wc2)
    avg = h2.mean(-1)
    mx = h2.max(-1)
    mlp = lambda v: jnp.maximum(v @ fc1_w.T + fc1_b, 0.0) @ fc2_w.T + fc2_b
    w = jax.nn.sigmoid(mlp(avg) + mlp(mx))
    return jnp.maximum(w[..., None] * h2 + x_ncl, 0.0)


if __name__ == "__main__":
    N, C, L = 16, 64, 16      # channels must be >= ChannelAttention ratio (16)
    H = C // 16

    key = jax.random.PRNGKey(0)
    kx, k1, k2, k3, k4 = jax.random.split(key, 5)

    x = jax.random.normal(kx, (N, C, L), jnp.float32)
    # Deterministic synthetic parameters (shapes match nn.Conv1d / nn.Linear).
    Wc1 = 0.05 * jax.random.normal(k1, (C, C, 3), jnp.float32)   # Conv1d weight (Cout, Cin, k)
    Wc2 = 0.05 * jax.random.normal(k2, (C, C, 3), jnp.float32)
    fc1_w = 0.1 * jax.random.normal(k3, (H, C), jnp.float32)     # Linear(C, C//16) weight
    fc2_w = 0.1 * jax.random.normal(k4, (C, H), jnp.float32)     # Linear(C//16, C) weight
    fc1_b = jnp.zeros((H,), jnp.float32)                          # biases init'd to 0 in the module
    fc2_b = jnp.zeros((C,), jnp.float32)

    ref = resblock_ref(x, Wc1, Wc2, fc1_w, fc1_b, fc2_w, fc2_b)

    # Full-f32 path, default batch_block (bb=8 -> lane-dense bb*L=128): tight check.
    out_f32 = jax.block_until_ready(
        resblock_pallas(x, Wc1, Wc2, fc1_w, fc1_b, fc2_w, fc2_b,
                        compute_dtype=jnp.float32))
    assert out_f32.shape == (N, C, L)
    assert jnp.allclose(out_f32, ref, rtol=1e-4, atol=5e-4), "f32 mismatch vs reference"

    # Exercise the zero-padded last block (N % batch_block != 0).
    out_pad = jax.block_until_ready(
        resblock_pallas(x, Wc1, Wc2, fc1_w, fc1_b, fc2_w, fc2_b,
                        compute_dtype=jnp.float32, batch_block=6))
    assert jnp.allclose(out_pad, ref, rtol=1e-4, atol=5e-4), "padded-block mismatch"

    # bf16-MXU conv path (f32 accumulate + f32 element-wise): looser tolerance.
    out_bf16 = jax.block_until_ready(
        resblock_pallas(x, Wc1, Wc2, fc1_w, fc1_b, fc2_w, fc2_b,
                        compute_dtype=jnp.bfloat16))
    assert out_bf16.shape == (N, C, L)
    assert jnp.allclose(out_bf16, ref, rtol=3e-2, atol=3e-2), "bf16 mismatch vs reference"

    print("KERNEL_OK")
</pallas_src>

<mosaic_0001>
module attributes {stable_mosaic.version = 11 : i64} {
  func.func @resblock_kernel(%arg0: i32, %arg1: memref<1x64x128xf32, #tpu.memory_space<vmem>>, %arg2: memref<3x64x64xf32, #tpu.memory_space<vmem>>, %arg3: memref<3x64x64xf32, #tpu.memory_space<vmem>>, %arg4: memref<4x64xf32, #tpu.memory_space<vmem>>, %arg5: memref<4x1xf32, #tpu.memory_space<vmem>>, %arg6: memref<64x4xf32, #tpu.memory_space<vmem>>, %arg7: memref<64x1xf32, #tpu.memory_space<vmem>>, %arg8: memref<128x8xf32, #tpu.memory_space<vmem>>, %arg9: memref<128x8xf32, #tpu.memory_space<vmem>>, %arg10: memref<8x128xf32, #tpu.memory_space<vmem>>, %arg11: memref<1x64x128xf32, #tpu.memory_space<vmem>>) attributes {dimension_semantics = [#tpu.dimension_semantics<parallel>], iteration_bounds = array<i64: 2>, scalar_prefetch = 0 : i64, scratch_operands = 0 : i64, tpu.core_type = #tpu.core_type<tc>, window_params = [{transform_indices = @transform_0, window_bounds = array<i64: 1, 64, 128>}, {pipeline_mode = #tpu.pipeline_mode<synchronous>, transform_indices = @transform_1, window_bounds = array<i64: 3, 64, 64>}, {pipeline_mode = #tpu.pipeline_mode<synchronous>, transform_indices = @transform_2, window_bounds = array<i64: 3, 64, 64>}, {pipeline_mode = #tpu.pipeline_mode<synchronous>, transform_indices = @transform_3, window_bounds = array<i64: 4, 64>}, {pipeline_mode = #tpu.pipeline_mode<synchronous>, transform_indices = @transform_4, window_bounds = array<i64: 4, 1>}, {pipeline_mode = #tpu.pipeline_mode<synchronous>, transform_indices = @transform_5, window_bounds = array<i64: 64, 4>}, {pipeline_mode = #tpu.pipeline_mode<synchronous>, transform_indices = @transform_6, window_bounds = array<i64: 64, 1>}, {pipeline_mode = #tpu.pipeline_mode<synchronous>, transform_indices = @transform_7, window_bounds = array<i64: 128, 8>}, {pipeline_mode = #tpu.pipeline_mode<synchronous>, transform_indices = @transform_8, window_bounds = array<i64: 128, 8>}, {pipeline_mode = #tpu.pipeline_mode<synchronous>, transform_indices = @transform_9, window_bounds = array<i64: 8, 128>}, {transform_indices = @transform_10, window_bounds = array<i64: 1, 64, 128>}]} {
    %0 = tpu.iota {dimensions = array<i32: 1>} : vector<1x128xi32>
    %c16_i32 = arith.constant 16 : i32
    %c0_i32 = arith.constant 0 : i32
    %1 = arith.cmpi eq, %c16_i32, %c0_i32 : i32
    %c1_i32 = arith.constant 1 : i32
    %2 = arith.select %1, %c1_i32, %c16_i32 : i32
    %3 = vector.broadcast %2 : i32 to vector<1x128xi32>
    %4 = arith.remsi %0, %3 : vector<1x128xi32>
    %c0_i32_0 = arith.constant 0 : i32
    %5 = vector.broadcast %c0_i32_0 : i32 to vector<1x128xi32>
    %6 = arith.cmpi ne, %4, %5 : vector<1x128xi32>
    %c0_i32_1 = arith.constant 0 : i32
    %7 = vector.broadcast %c0_i32_1 : i32 to vector<1x128xi32>
    %8 = arith.cmpi slt, %4, %7 : vector<1x128xi32>
    %c0_i32_2 = arith.constant 0 : i32
    %9 = arith.cmpi slt, %2, %c0_i32_2 : i32
    %10 = vector.broadcast %9 : i1 to vector<1x128xi1>
    %11 = vector.broadcast %10 : vector<1x128xi1> to vector<1x128xi1>
    %12 = arith.xori %8, %11 : vector<1x128xi1>
    %13 = arith.andi %12, %6 : vector<1x128xi1>
    %14 = vector.broadcast %2 : i32 to vector<1x128xi32>
    %15 = arith.addi %4, %14 : vector<1x128xi32>
    %16 = arith.select %13, %15, %4 : vector<1x128xi1>, vector<1x128xi32>
    %c0_i32_3 = arith.constant 0 : i32
    %17 = vector.broadcast %c0_i32_3 : i32 to vector<1x128xi32>
    %18 = arith.cmpi ne, %16, %17 : vector<1x128xi32>
    %19 = arith.extui %18 : vector<1x128xi1> to vector<1x128xi32>
    %20 = arith.sitofp %19 : vector<1x128xi32> to vector<1x128xf32>
    %c15_i32 = arith.constant 15 : i32
    %21 = vector.broadcast %c15_i32 : i32 to vector<1x128xi32>
    %22 = arith.cmpi ne, %16, %21 : vector<1x128xi32>
    %23 = arith.extui %22 : vector<1x128xi1> to vector<1x128xi32>
    %24 = arith.sitofp %23 : vector<1x128xi32> to vector<1x128xf32>
    %cst = arith.constant 0.000000e+00 : f32
    %25 = vector.broadcast %cst : f32 to vector<64x1xf32>
    %c0 = arith.constant 0 : index
    %c0_4 = arith.constant 0 : index
    %c0_5 = arith.constant 0 : index
    %26 = vector.load %arg1[%c0, %c0_4, %c0_5] : memref<1x64x128xf32, #tpu.memory_space<vmem>>, vector<1x64x128xf32>
    %27 = vector.shape_cast %26 : vector<1x64x128xf32> to vector<64x128xf32>
    %28 = vector.extract_strided_slice %27 {offsets = [0, 0], sizes = [64, 127], strides = [1, 1]} : vector<64x128xf32> to vector<64x127xf32>
    %29 = tpu.concatenate %25, %28 in 1 : vector<64x1xf32>, vector<64x127xf32> -> vector<64x128xf32>
    %30 = vector.broadcast %20 : vector<1x128xf32> to vector<64x128xf32>
    %31 = arith.mulf %29, %30 : vector<64x128xf32>
    %32 = vector.extract_strided_slice %27 {offsets = [0, 1], sizes = [64, 127], strides = [1, 1]} : vector<64x128xf32> to vector<64x127xf32>
    %33 = tpu.concatenate %32, %25 in 1 : vector<64x127xf32>, vector<64x1xf32> -> vector<64x128xf32>
    %34 = vector.broadcast %24 : vector<1x128xf32> to vector<64x128xf32>
    %35 = arith.mulf %33, %34 : vector<64x128xf32>
    %c1 = arith.constant 1 : index
    %c0_6 = arith.constant 0 : index
    %c0_7 = arith.constant 0 : index
    %36 = vector.load %arg2[%c1, %c0_6, %c0_7] : memref<3x64x64xf32, #tpu.memory_space<vmem>>, vector<1x64x64xf32>
    %37 = vector.shape_cast %36 : vector<1x64x64xf32> to vector<64x64xf32>
    %cst_8 = arith.constant dense<0.000000e+00> : vector<64x128xf32>
    %38 = tpu.matmul %37, %27, %cst_8 {dimension_numbers = #tpu.dot_dimension_numbers<[1], [0], [0], [1], [0, 0, 1, 1], [], []>} : vector<64x64xf32>, vector<64x128xf32>, vector<64x128xf32> -> vector<64x128xf32>
    %c0_9 = arith.constant 0 : index
    %c0_10 = arith.constant 0 : index
    %c0_11 = arith.constant 0 : index
    %39 = vector.load %arg2[%c0_9, %c0_10, %c0_11] : memref<3x64x64xf32, #tpu.memory_space<vmem>>, vector<1x64x64xf32>
    %40 = vector.shape_cast %39 : vector<1x64x64xf32> to vector<64x64xf32>
    %cst_12 = arith.constant dense<0.000000e+00> : vector<64x128xf32>
    %41 = tpu.matmul %40, %31, %cst_12 {dimension_numbers = #tpu.dot_dimension_numbers<[1], [0], [0], [1], [0, 0, 1, 1], [], []>} : vector<64x64xf32>, vector<64x128xf32>, vector<64x128xf32> -> vector<64x128xf32>
    %42 = arith.addf %38, %41 : vector<64x128xf32>
    %c2 = arith.constant 2 : index
    %c0_13 = arith.constant 0 : index
    %c0_14 = arith.constant 0 : index
    %43 = vector.load %arg2[%c2, %c0_13, %c0_14] : memref<3x64x64xf32, #tpu.memory_space<vmem>>, vector<1x64x64xf32>
    %44 = vector.shape_cast %43 : vector<1x64x64xf32> to vector<64x64xf32>
    %cst_15 = arith.constant dense<0.000000e+00> : vector<64x128xf32>
    %45 = tpu.matmul %44, %35, %cst_15 {dimension_numbers = #tpu.dot_dimension_numbers<[1], [0], [0], [1], [0, 0, 1, 1], [], []>} : vector<64x64xf32>, vector<64x128xf32>, vector<64x128xf32> -> vector<64x128xf32>
    %46 = arith.addf %42, %45 : vector<64x128xf32>
    %cst_16 = arith.constant 0.000000e+00 : f32
    %47 = vector.broadcast %cst_16 : f32 to vector<64x128xf32>
    %48 = arith.maximumf %46, %47 : vector<64x128xf32>
    %49 = vector.extract_strided_slice %48 {offsets = [0, 0], sizes = [64, 127], strides = [1, 1]} : vector<64x128xf32> to vector<64x127xf32>
    %50 = tpu.concatenate %25, %49 in 1 : vector<64x1xf32>, vector<64x127xf32> -> vector<64x128xf32>
    %51 = vector.broadcast %20 : vector<1x128xf32> to vector<64x128xf32>
    %52 = arith.mulf %50, %51 : vector<64x128xf32>
    %53 = vector.extract_strided_slice %48 {offsets = [0, 1], sizes = [64, 127], strides = [1, 1]} : vector<64x128xf32> to vector<64x127xf32>
    %54 = tpu.concatenate %53, %25 in 1 : vector<64x127xf32>, vector<64x1xf32> -> vector<64x128xf32>
    %55 = vector.broadcast %24 : vector<1x128xf32> to vector<64x128xf32>
    %56 = arith.mulf %54, %55 : vector<64x128xf32>
    %c1_17 = arith.constant 1 : index
    %c0_18 = arith.constant 0 : index
    %c0_19 = arith.constant 0 : index
    %57 = vector.load %arg3[%c1_17, %c0_18, %c0_19] : memref<3x64x64xf32, #tpu.memory_space<vmem>>, vector<1x64x64xf32>
    %58 = vector.shape_cast %57 : vector<1x64x64xf32> to vector<64x64xf32>
    %cst_20 = arith.constant dense<0.000000e+00> : vector<64x128xf32>
    %59 = tpu.matmul %58, %48, %cst_20 {dimension_numbers = #tpu.dot_dimension_numbers<[1], [0], [0], [1], [0, 0, 1, 1], [], []>} : vector<64x64xf32>, vector<64x128xf32>, vector<64x128xf32> -> vector<64x128xf32>
    %c0_21 = arith.constant 0 : index
    %c0_22 = arith.constant 0 : index
    %c0_23 = arith.constant 0 : index
    %60 = vector.load %arg3[%c0_21, %c0_22, %c0_23] : memref<3x64x64xf32, #tpu.memory_space<vmem>>, vector<1x64x64xf32>
    %61 = vector.shape_cast %60 : vector<1x64x64xf32> to vector<64x64xf32>
    %cst_24 = arith.constant dense<0.000000e+00> : vector<64x128xf32>
    %62 = tpu.matmul %61, %52, %cst_24 {dimension_numbers = #tpu.dot_dimension_numbers<[1], [0], [0], [1], [0, 0, 1, 1], [], []>} : vector<64x64xf32>, vector<64x128xf32>, vector<64x128xf32> -> vector<64x128xf32>
    %63 = arith.addf %59, %62 : vector<64x128xf32>
    %c2_25 = arith.constant 2 : index
    %c0_26 = arith.constant 0 : index
    %c0_27 = arith.constant 0 : index
    %64 = vector.load %arg3[%c2_25, %c0_26, %c0_27] : memref<3x64x64xf32, #tpu.memory_space<vmem>>, vector<1x64x64xf32>
    %65 = vector.shape_cast %64 : vector<1x64x64xf32> to vector<64x64xf32>
    %cst_28 = arith.constant dense<0.000000e+00> : vector<64x128xf32>
    %66 = tpu.matmul %65, %56, %cst_28 {dimension_numbers = #tpu.dot_dimension_numbers<[1], [0], [0], [1], [0, 0, 1, 1], [], []>} : vector<64x64xf32>, vector<64x128xf32>, vector<64x128xf32> -> vector<64x128xf32>
    %67 = arith.addf %63, %66 : vector<64x128xf32>
    %c0_29 = arith.constant 0 : index
    %c0_30 = arith.constant 0 : index
    %68 = vector.load %arg8[%c0_29, %c0_30] : memref<128x8xf32, #tpu.memory_space<vmem>>, vector<128x8xf32>
    %cst_31 = arith.constant dense<0.000000e+00> : vector<64x8xf32>
    %69 = tpu.matmul %67, %68, %cst_31 {dimension_numbers = #tpu.dot_dimension_numbers<[1], [0], [0], [1], [0, 0, 1, 1], [], []>} : vector<64x128xf32>, vector<128x8xf32>, vector<64x8xf32> -> vector<64x8xf32>
    %cst_32 = arith.constant -3.000000e+38 : f32
    %70 = vector.broadcast %cst_32 : f32 to vector<64x1xf32>
    %71 = vector.extract_strided_slice %67 {offsets = [0, 1], sizes = [64, 127], strides = [1, 1]} : vector<64x128xf32> to vector<64x127xf32>
    %72 = tpu.concatenate %71, %70 in 1 : vector<64x127xf32>, vector<64x1xf32> -> vector<64x128xf32>
    %73 = arith.maximumf %67, %72 : vector<64x128xf32>
    %cst_33 = arith.constant -3.000000e+38 : f32
    %74 = vector.broadcast %cst_33 : f32 to vector<64x2xf32>
    %75 = vector.extract_strided_slice %73 {offsets = [0, 2], sizes = [64, 126], strides = [1, 1]} : vector<64x128xf32> to vector<64x126xf32>
    %76 = tpu.concatenate %75, %74 in 1 : vector<64x126xf32>, vector<64x2xf32> -> vector<64x128xf32>
    %77 = arith.maximumf %73, %76 : vector<64x128xf32>
    %cst_34 = arith.constant -3.000000e+38 : f32
    %78 = vector.broadcast %cst_34 : f32 to vector<64x4xf32>
    %79 = vector.extract_strided_slice %77 {offsets = [0, 4], sizes = [64, 124], strides = [1, 1]} : vector<64x128xf32> to vector<64x124xf32>
    %80 = tpu.concatenate %79, %78 in 1 : vector<64x124xf32>, vector<64x4xf32> -> vector<64x128xf32>
    %81 = arith.maximumf %77, %80 : vector<64x128xf32>
    %cst_35 = arith.constant -3.000000e+38 : f32
    %82 = vector.broadcast %cst_35 : f32 to vector<64x8xf32>
    %83 = vector.extract_strided_slice %81 {offsets = [0, 8], sizes = [64, 120], strides = [1, 1]} : vector<64x128xf32> to vector<64x120xf32>
    %84 = tpu.concatenate %83, %82 in 1 : vector<64x120xf32>, vector<64x8xf32> -> vector<64x128xf32>
    %85 = arith.maximumf %81, %84 : vector<64x128xf32>
    %c0_36 = arith.constant 0 : index
    %c0_37 = arith.constant 0 : index
    %86 = vector.load %arg9[%c0_36, %c0_37] : memref<128x8xf32, #tpu.memory_space<vmem>>, vector<128x8xf32>
    %cst_38 = arith.constant dense<0.000000e+00> : vector<64x8xf32>
    %87 = tpu.matmul %85, %86, %cst_38 {dimension_numbers = #tpu.dot_dimension_numbers<[1], [0], [0], [1], [0, 0, 1, 1], [], []>} : vector<64x128xf32>, vector<128x8xf32>, vector<64x8xf32> -> vector<64x8xf32>
    %c0_39 = arith.constant 0 : index
    %c0_40 = arith.constant 0 : index
    %88 = vector.load %arg4[%c0_39, %c0_40] : memref<4x64xf32, #tpu.memory_space<vmem>>, vector<4x64xf32>
    %c0_41 = arith.constant 0 : index
    %c0_42 = arith.constant 0 : index
    %89 = vector.load %arg5[%c0_41, %c0_42] : memref<4x1xf32, #tpu.memory_space<vmem>>, vector<4x1xf32>
    %cst_43 = arith.constant dense<0.000000e+00> : vector<4x8xf32>
    %90 = tpu.matmul %88, %69, %cst_43 {dimension_numbers = #tpu.dot_dimension_numbers<[1], [0], [0], [1], [0, 0, 1, 1], [], []>} : vector<4x64xf32>, vector<64x8xf32>, vector<4x8xf32> -> vector<4x8xf32>
    %91 = vector.broadcast %89 : vector<4x1xf32> to vector<4x8xf32>
    %92 = arith.addf %90, %91 : vector<4x8xf32>
    %cst_44 = arith.constant 0.000000e+00 : f32
    %93 = vector.broadcast %cst_44 : f32 to vector<4x8xf32>
    %94 = arith.maximumf %92, %93 : vector<4x8xf32>
    %cst_45 = arith.constant dense<0.000000e+00> : vector<4x8xf32>
    %95 = tpu.matmul %88, %87, %cst_45 {dimension_numbers = #tpu.dot_dimension_numbers<[1], [0], [0], [1], [0, 0, 1, 1], [], []>} : vector<4x64xf32>, vector<64x8xf32>, vector<4x8xf32> -> vector<4x8xf32>
    %96 = vector.broadcast %89 : vector<4x1xf32> to vector<4x8xf32>
    %97 = arith.addf %95, %96 : vector<4x8xf32>
    %cst_46 = arith.constant 0.000000e+00 : f32
    %98 = vector.broadcast %cst_46 : f32 to vector<4x8xf32>
    %99 = arith.maximumf %97, %98 : vector<4x8xf32>
    %c0_47 = arith.constant 0 : index
    %c0_48 = arith.constant 0 : index
    %100 = vector.load %arg6[%c0_47, %c0_48] : memref<64x4xf32, #tpu.memory_space<vmem>>, vector<64x4xf32>
    %101 = arith.addf %94, %99 : vector<4x8xf32>
    %cst_49 = arith.constant dense<0.000000e+00> : vector<64x8xf32>
    %102 = tpu.matmul %100, %101, %cst_49 {dimension_numbers = #tpu.dot_dimension_numbers<[1], [0], [0], [1], [0, 0, 1, 1], [], []>} : vector<64x4xf32>, vector<4x8xf32>, vector<64x8xf32> -> vector<64x8xf32>
    %c0_50 = arith.constant 0 : index
    %c0_51 = arith.constant 0 : index
    %103 = vector.load %arg7[%c0_50, %c0_51] : memref<64x1xf32, #tpu.memory_space<vmem>>, vector<64x1xf32>
    %cst_52 = arith.constant 2.000000e+00 : f32
    %104 = vector.broadcast %cst_52 : f32 to vector<64x1xf32>
    %105 = arith.mulf %104, %103 : vector<64x1xf32>
    %106 = vector.broadcast %105 : vector<64x1xf32> to vector<64x8xf32>
    %107 = arith.addf %102, %106 : vector<64x8xf32>
    %108 = arith.negf %107 : vector<64x8xf32>
    %109 = math.exp %108 : vector<64x8xf32>
    %cst_53 = arith.constant 1.000000e+00 : f32
    %110 = vector.broadcast %cst_53 : f32 to vector<64x8xf32>
    %111 = arith.addf %110, %109 : vector<64x8xf32>
    %112 = arith.divf %110, %111 : vector<64x8xf32>
    %c0_54 = arith.constant 0 : index
    %c0_55 = arith.constant 0 : index
    %113 = vector.load %arg10[%c0_54, %c0_55] : memref<8x128xf32, #tpu.memory_space<vmem>>, vector<8x128xf32>
    %cst_56 = arith.constant dense<0.000000e+00> : vector<64x128xf32>
    %114 = tpu.matmul %112, %113, %cst_56 {dimension_numbers = #tpu.dot_dimension_numbers<[1], [0], [0], [1], [0, 0, 1, 1], [], []>} : vector<64x8xf32>, vector<8x128xf32>, vector<64x128xf32> -> vector<64x128xf32>
    %115 = arith.mulf %114, %67 : vector<64x128xf32>
    %116 = arith.addf %115, %27 : vector<64x128xf32>
    %cst_57 = arith.constant 0.000000e+00 : f32
    %117 = vector.broadcast %cst_57 : f32 to vector<64x128xf32>
    %118 = arith.maximumf %116, %117 : vector<64x128xf32>
    %c0_58 = arith.constant 0 : index
    %c0_59 = arith.constant 0 : index
    %c0_60 = arith.constant 0 : index
    %119 = vector.load %arg11[%c0_58, %c0_59, %c0_60] : memref<1x64x128xf32, #tpu.memory_space<vmem>>, vector<1x64x128xf32>
    %120 = vector.shape_cast %119 : vector<1x64x128xf32> to vector<64x128xf32>
    %121 = vector.shape_cast %118 : vector<64x128xf32> to vector<1x64x128xf32>
    tpu.vector_store %arg11[%c0_58, %c0_59, %c0_60], %121 {strides = array<i32>} : memref<1x64x128xf32, #tpu.memory_space<vmem>>, vector<1x64x128xf32>,
    return
  }
  func.func @transform_0(%arg0: i32) -> (i32, i32, i32) {
    %c0_i32 = arith.constant 0 : i32
    %c0_i32_0 = arith.constant 0 : i32
    %c0_i32_1 = arith.constant 0 : i32
    return %arg0, %c0_i32, %c0_i32_0 : i32, i32, i32
  }
  func.func @transform_1(%arg0: i32) -> (i32, i32, i32) {
    %c0_i32 = arith.constant 0 : i32
    %c0_i32_0 = arith.constant 0 : i32
    %c0_i32_1 = arith.constant 0 : i32
    %c0_i32_2 = arith.constant 0 : i32
    return %c0_i32, %c0_i32_0, %c0_i32_1 : i32, i32, i32
  }
  func.func @transform_2(%arg0: i32) -> (i32, i32, i32) {
    %c0_i32 = arith.constant 0 : i32
    %c0_i32_0 = arith.constant 0 : i32
    %c0_i32_1 = arith.constant 0 : i32
    %c0_i32_2 = arith.constant 0 : i32
    return %c0_i32, %c0_i32_0, %c0_i32_1 : i32, i32, i32
  }
  func.func @transform_3(%arg0: i32) -> (i32, i32) {
    %c0_i32 = arith.constant 0 : i32
    %c0_i32_0 = arith.constant 0 : i32
    %c0_i32_1 = arith.constant 0 : i32
    return %c0_i32, %c0_i32_0 : i32, i32
  }
  func.func @transform_4(%arg0: i32) -> (i32, i32) {
    %c0_i32 = arith.constant 0 : i32
    %c0_i32_0 = arith.constant 0 : i32
    %c0_i32_1 = arith.constant 0 : i32
    return %c0_i32, %c0_i32_0 : i32, i32
  }
  func.func @transform_5(%arg0: i32) -> (i32, i32) {
    %c0_i32 = arith.constant 0 : i32
    %c0_i32_0 = arith.constant 0 : i32
    %c0_i32_1 = arith.constant 0 : i32
    return %c0_i32, %c0_i32_0 : i32, i32
  }
  func.func @transform_6(%arg0: i32) -> (i32, i32) {
    %c0_i32 = arith.constant 0 : i32
    %c0_i32_0 = arith.constant 0 : i32
    %c0_i32_1 = arith.constant 0 : i32
    return %c0_i32, %c0_i32_0 : i32, i32
  }
  func.func @transform_7(%arg0: i32) -> (i32, i32) {
    %c0_i32 = arith.constant 0 : i32
    %c0_i32_0 = arith.constant 0 : i32
    %c0_i32_1 = arith.constant 0 : i32
    return %c0_i32, %c0_i32_0 : i32, i32
  }
  func.func @transform_8(%arg0: i32) -> (i32, i32) {
    %c0_i32 = arith.constant 0 : i32
    %c0_i32_0 = arith.constant 0 : i32
    %c0_i32_1 = arith.constant 0 : i32
    return %c0_i32, %c0_i32_0 : i32, i32
  }
  func.func @transform_9(%arg0: i32) -> (i32, i32) {
    %c0_i32 = arith.constant 0 : i32
    %c0_i32_0 = arith.constant 0 : i32
    %c0_i32_1 = arith.constant 0 : i32
    return %c0_i32, %c0_i32_0 : i32, i32
  }
  func.func @transform_10(%arg0: i32) -> (i32, i32, i32) {
    %c0_i32 = arith.constant 0 : i32
    %c0_i32_0 = arith.constant 0 : i32
    %c0_i32_1 = arith.constant 0 : i32
    return %arg0, %c0_i32, %c0_i32_0 : i32, i32, i32
  }
}

</mosaic_0001>

<llo_original>
// kernel: tpu_custom_call.1
$region0: #{tpu_custom_call.1}
  #allocation0 [shape = 'u32[]', space=smem, size = 0x4, offset = 0x4, fixed_abs, tag = 'smem constant byte address 0x4 - core index']
  #allocation1 [shape = 'u32[144,128]{1,0:T(1,128)}', space=vmem, size = 0x12000, scoped, tag = 'internal scratch']
  %s0 = inlined_call_operand.hbm [shape: f32[2,64,128], index: 0, kind: input, shape index: {}]
  %s1 = inlined_call_operand.vmem [shape: f32[3,64,64], index: 1, kind: input, shape index: {}]
  %s2 = inlined_call_operand.vmem [shape: f32[3,64,64], index: 2, kind: input, shape index: {}]
  %s3 = inlined_call_operand.vmem [shape: f32[4,64], index: 3, kind: input, shape index: {}]
  %s4 = inlined_call_operand.vmem [shape: f32[4,1], index: 4, kind: input, shape index: {}]
  %s5 = inlined_call_operand.vmem [shape: f32[64,4], index: 5, kind: input, shape index: {}]
  %s6 = inlined_call_operand.vmem [shape: f32[64,1], index: 6, kind: input, shape index: {}]
  %s7 = inlined_call_operand.vmem [shape: f32[128,8], index: 7, kind: input, shape index: {}]
  %s8 = inlined_call_operand.vmem [shape: f32[128,8], index: 8, kind: input, shape index: {}]
  %s9 = inlined_call_operand.vmem [shape: f32[8,128], index: 9, kind: input, shape index: {}]
  %s10 = inlined_call_operand.hbm [shape: f32[2,64,128], index: 10, kind: output, shape index: {}]
  %s11 = sld [smem:[#allocation0]]
  $region77: #{tpu_custom_call.1} parent=0
    _
  %s13 = ssub.s32 1, %s11
  %s14 = scalar_select 0, %s13, %s11
  $region1: #{tpu_custom_call.1} parent=0
    #allocation2 [shape = 'u8[65536]{0}', space=vmem, size = 0x10000, scoped, tag = 'input window, operand 0']
    #allocation3 [shape = 's32[2]{0}', space=sflag, size = 0x8, scoped, tag = 'scoped memory for tpu_custom_call.1']
    #allocation4 [shape = 's32[2]{0}', space=sflag, size = 0x8, scoped, tag = 'scoped memory for tpu_custom_call.1']
    #allocation5 [shape = 'u8[65536]{0}', space=vmem, size = 0x10000, scoped, tag = 'output window, operand 0']
    %15 = vsyncpa [#allocation3], 0
    %s16 = scalar_lea.sflag [#allocation3], 1
    %17 = vsyncpa %s16, 0
    %18 = vsyncpa [#allocation4], 0
    %s19 = scalar_lea.sflag [#allocation4], 1
    %20 = vsyncpa %s19, 0
    loop: start=0, step=1, limit=4
    $region2: #{tpu_custom_call.1} parent=1 // loop_pre_header
      _
    $region3: #{tpu_custom_call.1} parent=1 // loop_header
      %s22 = sphi 0, %s26
      %p23 = scmp.ge.s32.totalorder %s22, 4
      %s32 = sphi 0, %s34
      %s35 = sphi 0, %s32
      %s36 = sphi 0, %s35
      %s52 = sphi 0, %s36
      %s56 = sphi 0, %s56
      %s58 = sphi 0, %s56
      %s59 = sphi 0, %s58
      %s73 = sphi 0, %s59
      %s77 = sphi 0, %s77
      %s79 = sphi 0, %s77
      %s80 = sphi 0, %s79
      %s94 = sphi 0, %s80
      %s98 = sphi 0, %s98
      %s100 = sphi 0, %s98
      %s101 = sphi 0, %s100
      %s115 = sphi 0, %s101
      %s119 = sphi 0, %s119
      %s121 = sphi 0, %s119
      %s122 = sphi 0, %s121
      %s136 = sphi 0, %s122
      %s140 = sphi 0, %s140
      %s142 = sphi 0, %s140
      %s143 = sphi 0, %s142
      %s157 = sphi 0, %s143
      %s161 = sphi 0, %s161
      %s163 = sphi 0, %s161
      %s164 = sphi 0, %s163
      %s178 = sphi 0, %s164
      %s182 = sphi 0, %s182
      %s184 = sphi 0, %s182
      %s185 = sphi 0, %s184
      %s199 = sphi 0, %s185
      %s203 = sphi 0, %s203
      %s205 = sphi 0, %s203
      %s206 = sphi 0, %s205
      %s220 = sphi 0, %s206
      %s224 = sphi 0, %s224
      %s226 = sphi 0, %s224
      %s227 = sphi 0, %s226
      %s241 = sphi 0, %s227
      %s247 = sphi 0, %s249
      %s250 = sphi 0, %s247
      %s251 = sphi 0, %s250
      %s267 = sphi 0, %s251
    $region4: #{tpu_custom_call.1} parent=1 // loop_header_branch
      %25 = sbr.rel (%p23) target = $region8
    $region5: #{tpu_custom_call.1} parent=1 // loop_body
      %s27 = ssub.s32 %s22, 1
      %s28 = ssub.s32 %s22, 2
      %s29 = sadd.s32 %s22, 1
      %s30 = ssub.s32 %s22, %s29
      %p31 = scmp.eq.s32.totalorder %s30, 0
      %s33 = sadd.s32 %s32, 1
      %s34 = scalar_select %p31, %s32, %s33
      %p37 = pneg %p31
      %p38 = scmp.eq.s32.totalorder %s22, 1
      %p39 = por %p37, %p38
      %p40 = scmp.ne.s32.totalorder %s32, %s35
      %p41 = scmp.eq.s32.totalorder %s22, 0
      %p42 = por %p40, %p41
      %p43 = scmp.ne.s32.totalorder %s32, %s35
      %p44 = scmp.eq.s32.totalorder %s27, 1
      %p45 = por %p43, %p44
      %p46 = scmp.ne.s32.totalorder %s35, %s36
      %p47 = scmp.eq.s32.totalorder %s27, 0
      %p48 = por %p46, %p47
      %p49 = scmp.ne.s32.totalorder %s35, %s36
      %p50 = scmp.eq.s32.totalorder %s28, 1
      %p51 = por %p49, %p50
      %p53 = scmp.ne.s32.totalorder %s36, %s52
      %p54 = scmp.eq.s32.totalorder %s28, 0
      %p55 = por %p53, %p54
      %s57 = sadd.s32 %s56, 1
      %p60 = scmp.eq.s32.totalorder %s22, 1
      %p61 = scmp.ne.s32.totalorder %s56, %s58
      %p62 = scmp.eq.s32.totalorder %s22, 0
      %p63 = por %p61, %p62
      %p64 = scmp.ne.s32.totalorder %s56, %s58
      %p65 = scmp.eq.s32.totalorder %s27, 1
      %p66 = por %p64, %p65
      %p67 = scmp.ne.s32.totalorder %s58, %s59
      %p68 = scmp.eq.s32.totalorder %s27, 0
      %p69 = por %p67, %p68
      %p70 = scmp.ne.s32.totalorder %s58, %s59
      %p71 = scmp.eq.s32.totalorder %s28, 1
      %p72 = por %p70, %p71
      %p74 = scmp.ne.s32.totalorder %s59, %s73
      %p75 = scmp.eq.s32.totalorder %s28, 0
      %p76 = por %p74, %p75
      %s78 = sadd.s32 %s77, 1
      %p81 = scmp.eq.s32.totalorder %s22, 1
      %p82 = scmp.ne.s32.totalorder %s77, %s79
      %p83 = scmp.eq.s32.totalorder %s22, 0
      %p84 = por %p82, %p83
      %p85 = scmp.ne.s32.totalorder %s77, %s79
      %p86 = scmp.eq.s32.totalorder %s27, 1
      %p87 = por %p85, %p86
      %p88 = scmp.ne.s32.totalorder %s79, %s80
      %p89 = scmp.eq.s32.totalorder %s27, 0
      %p90 = por %p88, %p89
      %p91 = scmp.ne.s32.totalorder %s79, %s80
      %p92 = scmp.eq.s32.totalorder %s28, 1
      %p93 = por %p91, %p92
      %p95 = scmp.ne.s32.totalorder %s80, %s94
      %p96 = scmp.eq.s32.totalorder %s28, 0
      %p97 = por %p95, %p96
      %s99 = sadd.s32 %s98, 1
      %p102 = scmp.eq.s32.totalorder %s22, 1
      %p103 = scmp.ne.s32.totalorder %s98, %s100
      %p104 = scmp.eq.s32.totalorder %s22, 0
      %p105 = por %p103, %p104
      %p106 = scmp.ne.s32.totalorder %s98, %s100
      %p107 = scmp.eq.s32.totalorder %s27, 1
      %p108 = por %p106, %p107
      %p109 = scmp.ne.s32.totalorder %s100, %s101
      %p110 = scmp.eq.s32.totalorder %s27, 0
      %p111 = por %p109, %p110
      %p112 = scmp.ne.s32.totalorder %s100, %s101
      %p113 = scmp.eq.s32.totalorder %s28, 1
      %p114 = por %p112, %p113
      %p116 = scmp.ne.s32.totalorder %s101, %s115
      %p117 = scmp.eq.s32.totalorder %s28, 0
      %p118 = por %p116, %p117
      %s120 = sadd.s32 %s119, 1
      %p123 = scmp.eq.s32.totalorder %s22, 1
      %p124 = scmp.ne.s32.totalorder %s119, %s121
      %p125 = scmp.eq.s32.totalorder %s22, 0
      %p126 = por %p124, %p125
      %p127 = scmp.ne.s32.totalorder %s119, %s121
      %p128 = scmp.eq.s32.totalorder %s27, 1
      %p129 = por %p127, %p128
      %p130 = scmp.ne.s32.totalorder %s121, %s122
      %p131 = scmp.eq.s32.totalorder %s27, 0
      %p132 = por %p130, %p131
      %p133 = scmp.ne.s32.totalorder %s121, %s122
      %p134 = scmp.eq.s32.totalorder %s28, 1
      %p135 = por %p133, %p134
      %p137 = scmp.ne.s32.totalorder %s122, %s136
      %p138 = scmp.eq.s32.totalorder %s28, 0
      %p139 = por %p137, %p138
      %s141 = sadd.s32 %s140, 1
      %p144 = scmp.eq.s32.totalorder %s22, 1
      %p145 = scmp.ne.s32.totalorder %s140, %s142
      %p146 = scmp.eq.s32.totalorder %s22, 0
      %p147 = por %p145, %p146
      %p148 = scmp.ne.s32.totalorder %s140, %s142
      %p149 = scmp.eq.s32.totalorder %s27, 1
      %p150 = por %p148, %p149
      %p151 = scmp.ne.s32.totalorder %s142, %s143
      %p152 = scmp.eq.s32.totalorder %s27, 0
      %p153 = por %p151, %p152
      %p154 = scmp.ne.s32.totalorder %s142, %s143
      %p155 = scmp.eq.s32.totalorder %s28, 1
      %p156 = por %p154, %p155
      %p158 = scmp.ne.s32.totalorder %s143, %s157
      %p159 = scmp.eq.s32.totalorder %s28, 0
      %p160 = por %p158, %p159
      %s162 = sadd.s32 %s161, 1
      %p165 = scmp.eq.s32.totalorder %s22, 1
      %p166 = scmp.ne.s32.totalorder %s161, %s163
      %p167 = scmp.eq.s32.totalorder %s22, 0
      %p168 = por %p166, %p167
      %p169 = scmp.ne.s32.totalorder %s161, %s163
      %p170 = scmp.eq.s32.totalorder %s27, 1
      %p171 = por %p169, %p170
      %p172 = scmp.ne.s32.totalorder %s163, %s164
      %p173 = scmp.eq.s32.totalorder %s27, 0
      %p174 = por %p172, %p173
      %p175 = scmp.ne.s32.totalorder %s163, %s164
      %p176 = scmp.eq.s32.totalorder %s28, 1
      %p177 = por %p175, %p176
      %p179 = scmp.ne.s32.totalorder %s164, %s178
      %p180 = scmp.eq.s32.totalorder %s28, 0
      %p181 = por %p179, %p180
      %s183 = sadd.s32 %s182, 1
      %p186 = scmp.eq.s32.totalorder %s22, 1
      %p187 = scmp.ne.s32.totalorder %s182, %s184
      %p188 = scmp.eq.s32.totalorder %s22, 0
      %p189 = por %p187, %p188
      %p190 = scmp.ne.s32.totalorder %s182, %s184
      %p191 = scmp.eq.s32.totalorder %s27, 1
      %p192 = por %p190, %p191
      %p193 = scmp.ne.s32.totalorder %s184, %s185
      %p194 = scmp.eq.s32.totalorder %s27, 0
      %p195 = por %p193, %p194
      %p196 = scmp.ne.s32.totalorder %s184, %s185
      %p197 = scmp.eq.s32.totalorder %s28, 1
      %p198 = por %p196, %p197
      %p200 = scmp.ne.s32.totalorder %s185, %s199
      %p201 = scmp.eq.s32.totalorder %s28, 0
      %p202 = por %p200, %p201
      %s204 = sadd.s32 %s203, 1
      %p207 = scmp.eq.s32.totalorder %s22, 1
      %p208 = scmp.ne.s32.totalorder %s203, %s205
      %p209 = scmp.eq.s32.totalorder %s22, 0
      %p210 = por %p208, %p209
      %p211 = scmp.ne.s32.totalorder %s203, %s205
      %p212 = scmp.eq.s32.totalorder %s27, 1
      %p213 = por %p211, %p212
      %p214 = scmp.ne.s32.totalorder %s205, %s206
      %p215 = scmp.eq.s32.totalorder %s27, 0
      %p216 = por %p214, %p215
      %p217 = scmp.ne.s32.totalorder %s205, %s206
      %p218 = scmp.eq.s32.totalorder %s28, 1
      %p219 = por %p217, %p218
      %p221 = scmp.ne.s32.totalorder %s206, %s220
      %p222 = scmp.eq.s32.totalorder %s28, 0
      %p223 = por %p221, %p222
      %s225 = sadd.s32 %s224, 1
      %p228 = scmp.eq.s32.totalorder %s22, 1
      %p229 = scmp.ne.s32.totalorder %s224, %s226
      %p230 = scmp.eq.s32.totalorder %s22, 0
      %p231 = por %p229, %p230
      %p232 = scmp.ne.s32.totalorder %s224, %s226
      %p233 = scmp.eq.s32.totalorder %s27, 1
      %p234 = por %p232, %p233
      %p235 = scmp.ne.s32.totalorder %s226, %s227
      %p236 = scmp.eq.s32.totalorder %s27, 0
      %p237 = por %p235, %p236
      %p238 = scmp.ne.s32.totalorder %s226, %s227
      %p239 = scmp.eq.s32.totalorder %s28, 1
      %p240 = por %p238, %p239
      %p242 = scmp.ne.s32.totalorder %s227, %s241
      %p243 = scmp.eq.s32.totalorder %s28, 0
      %p244 = por %p242, %p243
      %s245 = ssub.s32 %s22, %s29
      %p246 = scmp.eq.s32.totalorder %s245, 0
      %s248 = sadd.s32 %s247, 1
      %s249 = scalar_select %p246, %s247, %s248
      %p252 = pneg %p246
      %p253 = scmp.eq.s32.totalorder %s22, 1
      %p254 = por %p252, %p253
      %p255 = scmp.ne.s32.totalorder %s247, %s250
      %p256 = scmp.eq.s32.totalorder %s22, 0
      %p257 = por %p255, %p256
      %p258 = scmp.ne.s32.totalorder %s247, %s250
      %p259 = scmp.eq.s32.totalorder %s27, 1
      %p260 = por %p258, %p259
      %p261 = scmp.ne.s32.totalorder %s250, %s251
      %p262 = scmp.eq.s32.totalorder %s27, 0
      %p263 = por %p261, %p262
      %p264 = scmp.ne.s32.totalorder %s250, %s251
      %p265 = scmp.eq.s32.totalorder %s28, 1
      %p266 = por %p264, %p265
      %p268 = scmp.ne.s32.totalorder %s251, %s267
      %p269 = scmp.eq.s32.totalorder %s28, 0
      %p270 = por %p268, %p269
      %p271 = scmp.le.s32.totalorder 1, %s22
      %p272 = scmp.lt.s32.totalorder %s22, 3
      %p273 = pnand %p271, %p272
      %p274 = pneg %p273
      // Predicated region
      $region9: #{tpu_custom_call.1} parent=5 // pred_check
        _
      $region10: #{tpu_custom_call.1} parent=5 // pred_check_branch
        %276 = sbr.rel (%p273) target = $region12
      $region11: #{tpu_custom_call.1} parent=5 // pred_region
        %s277 = ssub.s32 %s22, 1
        // Predicated region
        $region13: #{tpu_custom_call.1} parent=11 // pred_check
          %p278 = pneg %p69
        $region14: #{tpu_custom_call.1} parent=11 // pred_check_branch
          %280 = sbr.rel (%p278) target = $region16
        $region15: #{tpu_custom_call.1} parent=11 // pred_region
          _
        $region16: #{tpu_custom_call.1} parent=11 // pred_fallthru
          _
        // Predicated region
        $region17: #{tpu_custom_call.1} parent=11 // pred_check
          %p281 = pneg %p90
        $region18: #{tpu_custom_call.1} parent=11 // pred_check_branch
          %283 = sbr.rel (%p281) target = $region20
        $region19: #{tpu_custom_call.1} parent=11 // pred_region
          _
        $region20: #{tpu_custom_call.1} parent=11 // pred_fallthru
          _
        // Predicated region
        $region21: #{tpu_custom_call.1} parent=11 // pred_check
          %p284 = pneg %p111
        $region22: #{tpu_custom_call.1} parent=11 // pred_check_branch
          %286 = sbr.rel (%p284) target = $region24
        $region23: #{tpu_custom_call.1} parent=11 // pred_region
          _
        $region24: #{tpu_custom_call.1} parent=11 // pred_fallthru
          _
        // Predicated region
        $region25: #{tpu_custom_call.1} parent=11 // pred_check
          %p287 = pneg %p132
        $region26: #{tpu_custom_call.1} parent=11 // pred_check_branch
          %289 = sbr.rel (%p287) target = $region28
        $region27: #{tpu_custom_call.1} parent=11 // pred_region
          _
        $region28: #{tpu_custom_call.1} parent=11 // pred_fallthru
          _
        // Predicated region
        $region29: #{tpu_custom_call.1} parent=11 // pred_check
          %p290 = pneg %p153
        $region30: #{tpu_custom_call.1} parent=11 // pred_check_branch
          %292 = sbr.rel (%p290) target = $region32
        $region31: #{tpu_custom_call.1} parent=11 // pred_region
          _
        $region32: #{tpu_custom_call.1} parent=11 // pred_fallthru
          _
        // Predicated region
        $region33: #{tpu_custom_call.1} parent=11 // pred_check
          %p293 = pneg %p174
        $region34: #{tpu_custom_call.1} parent=11 // pred_check_branch
          %295 = sbr.rel (%p293) target = $region36
        $region35: #{tpu_custom_call.1} parent=11 // pred_region
          _
        $region36: #{tpu_custom_call.1} parent=11 // pred_fallthru
          _
        // Predicated region
        $region37: #{tpu_custom_call.1} parent=11 // pred_check
          %p296 = pneg %p195
        $region38: #{tpu_custom_call.1} parent=11 // pred_check_branch
          %298 = sbr.rel (%p296) target = $region40
        $region39: #{tpu_custom_call.1} parent=11 // pred_region
          _
        $region40: #{tpu_custom_call.1} parent=11 // pred_fallthru
          _
        // Predicated region
        $region41: #{tpu_custom_call.1} parent=11 // pred_check
          %p299 = pneg %p216
        $region42: #{tpu_custom_call.1} parent=11 // pred_check_branch
          %301 = sbr.rel (%p299) target = $region44
        $region43: #{tpu_custom_call.1} parent=11 // pred_region
          _
        $region44: #{tpu_custom_call.1} parent=11 // pred_fallthru
          _
        // Predicated region
        $region45: #{tpu_custom_call.1} parent=11 // pred_check
          %p302 = pneg %p237
        $region46: #{tpu_custom_call.1} parent=11 // pred_check_branch
          %304 = sbr.rel (%p302) target = $region48
        $region47: #{tpu_custom_call.1} parent=11 // pred_region
          _
        $region48: #{tpu_custom_call.1} parent=11 // pred_fallthru
          _
      $region12: #{tpu_custom_call.1} parent=5 // pred_fallthru
        _
      %p305 = scmp.lt.s32.totalorder %s22, 2
      // Predicated region
      $region49: #{tpu_custom_call.1} parent=5 // pred_check
        %p306 = pneg %p305
      $region50: #{tpu_custom_call.1} parent=5 // pred_check_branch
        %308 = sbr.rel (%p306) target = $region52
      $region51: #{tpu_custom_call.1} parent=5 // pred_region
        // Predicated region
        $region53: #{tpu_custom_call.1} parent=51 // pred_check
          %p309 = pneg %p42
        $region54: #{tpu_custom_call.1} parent=51 // pred_check_branch
          %311 = sbr.rel (%p309) target = $region56
        $region55: #{tpu_custom_call.1} parent=51 // pred_region
          %s312 = sand.u32 %s32, 1
          %s313 = scalar_lea.sflag [#allocation3], %s312
          %s314 = sand.u32 %s32, 1
          %s315 = smul.addr %s314, 64
          %s316 = scalar_lea.vmem [#allocation2], %s315
          %s318 = ssub.s32 1024, 1024
          %319 = vsyncadd %s313, %s318
          %s320 = smul.addr %s22, 8
          %s321 = smul.addr %s320, 128
          %s322 = scalar_lea.hbm %s0, %s321
          %s323 = sshll.u32 %s316, 4
          %s324 = int_to_ptr.vmem [resolvable:$true] %s323
          %329 = dma.hbm_to_vmem [thread:$0]  %s322, 1024, %s324, %s313, 128, 128, 8
        $region56: #{tpu_custom_call.1} parent=51 // pred_fallthru
          _
      $region52: #{tpu_custom_call.1} parent=5 // pred_fallthru
        _
      %p330 = scmp.le.s32.totalorder 1, %s22
      %p331 = scmp.lt.s32.totalorder %s22, 3
      %p332 = pnand %p330, %p331
      %p333 = pneg %p332
      // Predicated region
      $region57: #{tpu_custom_call.1} parent=5 // pred_check
        _
      $region58: #{tpu_custom_call.1} parent=5 // pred_check_branch
        %335 = sbr.rel (%p332) target = $region60
      $region59: #{tpu_custom_call.1} parent=5 // pred_region
        %s336 = ssub.s32 %s22, 1
        %s337 = sand.u32 %s35, 1
        %s338 = scalar_lea.sflag [#allocation3], %s337
        %s339 = sand.u32 %s35, 1
        %s340 = smul.addr %s339, 64
        %s341 = scalar_lea.vmem [#allocation2], %s340
        // Predicated region
        $region61: #{tpu_custom_call.1} parent=59 // pred_check
          %p342 = pneg %p48
        $region62: #{tpu_custom_call.1} parent=59 // pred_check_branch
          %344 = sbr.rel (%p342) target = $region64
        $region63: #{tpu_custom_call.1} parent=59 // pred_region
          %345 = dma.done %s338, 1024
        $region64: #{tpu_custom_call.1} parent=59 // pred_fallthru
          _
        %s346 = sand.u32 %s35, 1
        %s347 = scalar_lea.sflag [#allocation3], %s346
        %s348 = sand.u32 %s35, 1
        %s349 = smul.addr %s348, 64
        %s350 = scalar_lea.vmem [#allocation2], %s349
        %p351 = pneg %p48
        %p352 = pneg %p45
        %p353 = pneg %p69
        %p354 = pneg %p66
        %p355 = pneg %p90
        %p356 = pneg %p87
        %p357 = pneg %p111
        %p358 = pneg %p108
        %p359 = pneg %p132
        %p360 = pneg %p129
        %p361 = pneg %p153
        %p362 = pneg %p150
        %p363 = pneg %p174
        %p364 = pneg %p171
        %p365 = pneg %p195
        %p366 = pneg %p192
        %p367 = pneg %p216
        %p368 = pneg %p213
        %p369 = pneg %p237
        %p370 = pneg %p234
        %p371 = pneg %p263
        %p372 = pneg %p260
        %s373 = sand.u32 %s250, 1
        %s374 = scalar_lea.sflag [#allocation4], %s373
        %s375 = sand.u32 %s250, 1
        %s376 = smul.addr %s375, 64
        %s377 = scalar_lea.vmem [#allocation5], %s376
        %v378 = vlaneseq
        %v379 = vand.u32 %v378, 127
        %vm380 = vcmp.lt.s32.totalorder %v379, 0
        %v381 = vsub.s32 0, %v379
        %v382 = vsel %vm380, %v381, %v379
        %v383 = vshrl.u32 %v382, 4
        %v384 = vand.u32 %v382, 15
        %v385 = vsub.s32 0, %v384
        %v386 = vsel %vm380, %v385, %v384
        %vm387 = vcmp.ne.s32.totalorder %v386, 0
        %vm388 = vcmp.lt.s32.totalorder %v386, 0
        %vm389 = vmand %vm388, %vm387
        %v390 = vadd.s32 %v386, 16
        %v391 = vsel %vm389, %v390, %v386
        %vm392 = vcmp.ne.s32.totalorder %v391, 0
        %v393 = vsel %vm392, 1, 0
        %v394 = vcvt.s32.f32 %v393
        %vm395 = vcmp.ne.s32.totalorder %v391, 15
        %v396 = vsel %vm395, 1, 0
        %v397 = vcvt.s32.f32 %v396
        %v398 = vld [vmem:[%s341] sm:$0xff]
        %v399 = vld [vmem:[%s341 + $0x8] sm:$0xff]
        %v400 = vld [vmem:[%s341 + $0x10] sm:$0xff]
        %v401 = vld [vmem:[%s341 + $0x18] sm:$0xff]
        %v402 = vld [vmem:[%s341 + $0x20] sm:$0xff]
        %v403 = vld [vmem:[%s341 + $0x28] sm:$0xff]
        %v404 = vld [vmem:[%s341 + $0x30] sm:$0xff]
        %v405 = vld [vmem:[%s341 + $0x38] sm:$0xff]
        %414 = vrot.lane.b32.xlu0 %v398, 1
        %v415 = vpop.permute.xlu0 %414
        %416 = vrot.lane.b32.xlu0 %v399, 1
        %v417 = vpop.permute.xlu0 %416
        %418 = vrot.lane.b32.xlu0 %v400, 1
        %v419 = vpop.permute.xlu0 %418
        %420 = vrot.lane.b32.xlu0 %v401, 1
        %v421 = vpop.permute.xlu0 %420
        %422 = vrot.lane.b32.xlu0 %v402, 1
        %v423 = vpop.permute.xlu0 %422
        %424 = vrot.lane.b32.xlu0 %v403, 1
        %v425 = vpop.permute.xlu0 %424
        %426 = vrot.lane.b32.xlu0 %v404, 1
        %v427 = vpop.permute.xlu0 %426
        %428 = vrot.lane.b32.xlu0 %v405, 1
        %v429 = vpop.permute.xlu0 %428
        %vm438 = vcmask 7168
        %v439 = vsel %vm438, 0.0, %v415
        %v440 = vsel %vm438, 0.0, %v417
        %v441 = vsel %vm438, 0.0, %v419
        %v442 = vsel %vm438, 0.0, %v421
        %v443 = vsel %vm438, 0.0, %v423
        %v444 = vsel %vm438, 0.0, %v425
        %v445 = vsel %vm438, 0.0, %v427
        %v446 = vsel %vm438, 0.0, %v429
        %v447 = vmul.f32 %v439, %v394
        %v448 = vmul.f32 %v440, %v394
        %v449 = vmul.f32 %v441, %v394
        %v450 = vmul.f32 %v442, %v394
        %v451 = vmul.f32 %v443, %v394
        %v452 = vmul.f32 %v444, %v394
        %v453 = vmul.f32 %v445, %v394
        %v454 = vmul.f32 %v446, %v394
        %455 = vrot.lane.b32.xlu0 %v398, 127
        %v456 = vpop.permute.xlu0 %455
        %457 = vrot.lane.b32.xlu0 %v399, 127
        %v458 = vpop.permute.xlu0 %457
        %459 = vrot.lane.b32.xlu0 %v400, 127
        %v460 = vpop.permute.xlu0 %459
        %461 = vrot.lane.b32.xlu0 %v401, 127
        %v462 = vpop.permute.xlu0 %461
        %463 = vrot.lane.b32.xlu0 %v402, 127
        %v464 = vpop.permute.xlu0 %463
        %465 = vrot.lane.b32.xlu0 %v403, 127
        %v466 = vpop.permute.xlu0 %465
        %467 = vrot.lane.b32.xlu0 %v404, 127
        %v468 = vpop.permute.xlu0 %467
        %469 = vrot.lane.b32.xlu0 %v405, 127
        %v470 = vpop.permute.xlu0 %469
        %vm479 = vcmask 1039360
        %v480 = vsel %vm479, %v456, 0.0
        %v481 = vsel %vm479, %v458, 0.0
        %v482 = vsel %vm479, %v460, 0.0
        %v483 = vsel %vm479, %v462, 0.0
        %v484 = vsel %vm479, %v464, 0.0
        %v485 = vsel %vm479, %v466, 0.0
        %v486 = vsel %vm479, %v468, 0.0
        %v487 = vsel %vm479, %v470, 0.0
        %v488 = vmul.f32 %v480, %v397
        %v489 = vmul.f32 %v481, %v397
        %v490 = vmul.f32 %v482, %v397
        %v491 = vmul.f32 %v483, %v397
        %v492 = vmul.f32 %v484, %v397
        %v493 = vmul.f32 %v485, %v397
        %v494 = vmul.f32 %v486, %v397
        %v495 = vmul.f32 %v487, %v397
        %s496 = scalar_lea.vmem %s1, 64
        %v497 = vld [vmem:[%s496] sm:$0xff]
        %v498 = vld [vmem:[%s496 + $0x8] sm:$0xff]
        %v499 = vld [vmem:[%s496 + $0x10] sm:$0xff]
        %v500 = vld [vmem:[%s496 + $0x18] sm:$0xff]
        %v501 = vld [vmem:[%s496 + $0x20] sm:$0xff]
        %v502 = vld [vmem:[%s496 + $0x28] sm:$0xff]
        %v503 = vld [vmem:[%s496 + $0x30] sm:$0xff]
        %v504 = vld [vmem:[%s496 + $0x38] sm:$0xff]
        %v505 = vld [vmem:[%s1] sm:$0xff]
        %v506 = vld [vmem:[%s1 + $0x8] sm:$0xff]
        %v507 = vld [vmem:[%s1 + $0x10] sm:$0xff]
        %v508 = vld [vmem:[%s1 + $0x18] sm:$0xff]
        %v509 = vld [vmem:[%s1 + $0x20] sm:$0xff]
        %v510 = vld [vmem:[%s1 + $0x28] sm:$0xff]
        %v511 = vld [vmem:[%s1 + $0x30] sm:$0xff]
        %v512 = vld [vmem:[%s1 + $0x38] sm:$0xff]
        %vm513 = vcmask 523264
        %v515 = vsel %vm513, %v505, 0
        %v518 = vsel %vm513, %v506, 0
        %v521 = vsel %vm513, %v507, 0
        %v524 = vsel %vm513, %v508, 0
        %v527 = vsel %vm513, %v509, 0
        %v530 = vsel %vm513, %v510, 0
        %v533 = vsel %vm513, %v511, 0
        %v536 = vsel %vm513, %v512, 0
        %538 = vmatprep.subr.mxu0 0.0
        %539 = vmatpush1.msra.mxu0 %v447
        %540 = vmatprep.subr.mxu0 0.0
        %541 = vmatpush1.msra.mxu0 %v448
        %542 = vmatprep.subr.mxu0 0.0
        %543 = vmatpush1.msra.mxu0 %v449
        %544 = vmatprep.subr.mxu0 0.0
        %545 = vmatpush1.msra.mxu0 %v450
        %546 = vmatprep.subr.mxu0 0.0
        %547 = vmatpush1.msra.mxu0 %v451
        %548 = vmatprep.subr.mxu0 0.0
        %549 = vmatpush1.msra.mxu0 %v452
        %550 = vmatprep.subr.mxu0 0.0
        %551 = vmatpush1.msra.mxu0 %v453
        %552 = vmatprep.subr.mxu0 0.0
        %553 = vmatpush1.msra.mxu0 %v454
        %554 = vmatprep.subr.mxu0 0.0
        %555 = vmatpush1.msra.mxu0 0.0
        %556 = vmatprep.subr.mxu0 0.0
        %557 = vmatpush1.msra.mxu0 0.0
        %558 = vmatprep.subr.mxu0 0.0
        %559 = vmatpush1.msra.mxu0 0.0
        %560 = vmatprep.subr.mxu0 0.0
        %561 = vmatpush1.msra.mxu0 0.0
        %562 = vmatprep.subr.mxu0 0.0
        %563 = vmatpush1.msra.mxu0 0.0
        %564 = vmatprep.subr.mxu0 0.0
        %565 = vmatpush1.msra.mxu0 0.0
        %566 = vmatprep.subr.mxu0 0.0
        %567 = vmatpush1.msra.mxu0 0.0
        %568 = vmatprep.subr.mxu0 0.0
        %569 = vmatpush1.msra.mxu0 0.0
        %570 = vmatprep.subr.mxu0 0.0
        %571 = vmatpush1.msra.mxu0 0.0
        %572 = vmatprep.subr.mxu0 0.0
        %573 = vmatpush1.msra.mxu0 0.0
        %574 = vmatprep.subr.mxu0 0.0
        %575 = vmatpush1.msra.mxu0 0.0
        %576 = vmatprep.subr.mxu0 0.0
        %577 = vmatpush1.msra.mxu0 0.0
        %578 = vmatprep.subr.mxu0 0.0
        %579 = vmatpush1.msra.mxu0 0.0
        %580 = vmatprep.subr.mxu0 0.0
        %581 = vmatpush1.msra.mxu0 0.0
        %582 = vmatprep.subr.mxu0 0.0
        %583 = vmatpush1.msra.mxu0 0.0
        %584 = vmatprep.subr.mxu0 0.0
        %585 = vmatpush1.msra.mxu0 0.0
        %586 = vmatprep.subr.mxu0 0.0
        %587 = vmatpush1.msra.mxu0 0.0
        %588 = vmatprep.subr.mxu0 0.0
        %589 = vmatpush1.msra.mxu0 0.0
        %590 = vmatprep.subr.mxu0 0.0
        %591 = vmatpush1.msra.mxu0 0.0
        %592 = vmatprep.subr.mxu0 0.0
        %593 = vmatpush1.msra.mxu0 0.0
        %594 = vmatprep.subr.mxu0 0.0
        %595 = vmatpush1.msra.mxu0 0.0
        %596 = vmatprep.subr.mxu0 0.0
        %597 = vmatpush1.msra.mxu0 0.0
        %598 = vmatprep.subr.mxu0 0.0
        %599 = vmatpush1.msra.mxu0 0.0
        %600 = vmatprep.subr.mxu0 0.0
        %601 = vmatpush1.msra.mxu0 0.0
        %602 = vmatprep.mubr.f32.mxu0 0.0
        %603 = vmatmul.mubr.f32.gmra.mrb[0].mxu0 %v515
        %v604 = vpop.f32.mrb[0].mxu0
        %v605 = vadd.f32 0.0, %v604
        %v606 = vpop.f32.mrb[0].mxu0
        %607 = vmatprep.mubr.f32.mxu0 0.0
        %608 = vmatmul.mubr.f32.gmra.mrb[0].mxu0 %v518
        %v609 = vpop.f32.mrb[0].mxu0
        %v610 = vadd.f32 0.0, %v609
        %v611 = vpop.f32.mrb[0].mxu0
        %612 = vmatprep.mubr.f32.mxu0 0.0
        %613 = vmatmul.mubr.f32.gmra.mrb[0].mxu0 %v521
        %v614 = vpop.f32.mrb[0].mxu0
        %v615 = vadd.f32 0.0, %v614
        %v616 = vpop.f32.mrb[0].mxu0
        %617 = vmatprep.mubr.f32.mxu0 0.0
        %618 = vmatmul.mubr.f32.gmra.mrb[0].mxu0 %v524
        %v619 = vpop.f32.mrb[0].mxu0
        %v620 = vadd.f32 0.0, %v619
        %v621 = vpop.f32.mrb[0].mxu0
        %622 = vmatprep.mubr.f32.mxu0 0.0
        %623 = vmatmul.mubr.f32.gmra.mrb[0].mxu0 %v527
        %v624 = vpop.f32.mrb[0].mxu0
        %v625 = vadd.f32 0.0, %v624
        %v626 = vpop.f32.mrb[0].mxu0
        %627 = vmatprep.mubr.f32.mxu0 0.0
        %628 = vmatmul.mubr.f32.gmra.mrb[0].mxu0 %v530
        %v629 = vpop.f32.mrb[0].mxu0
        %v630 = vadd.f32 0.0, %v629
        %v631 = vpop.f32.mrb[0].mxu0
        %632 = vmatprep.mubr.f32.mxu0 0.0
        %633 = vmatmul.mubr.f32.gmra.mrb[0].mxu0 %v533
        %v634 = vpop.f32.mrb[0].mxu0
        %v635 = vadd.f32 0.0, %v634
        %v636 = vpop.f32.mrb[0].mxu0
        %637 = vmatprep.mubr.f32.mxu0 0.0
        %638 = vmatmul.mubr.f32.gmra.mrb[0].mxu0 %v536
        %v639 = vpop.f32.mrb[0].mxu0
        %v640 = vadd.f32 0.0, %v639
        %v641 = vpop.f32.mrb[0].mxu0
        %642 = vdwg.mxu0
        %v644 = vsel %vm513, %v497, 0
        %v647 = vsel %vm513, %v498, 0
        %v650 = vsel %vm513, %v499, 0
        %v653 = vsel %vm513, %v500, 0
        %v656 = vsel %vm513, %v501, 0
        %v659 = vsel %vm513, %v502, 0
        %v662 = vsel %vm513, %v503, 0
        %v665 = vsel %vm513, %v504, 0
        %667 = vmatprep.subr.mxu0 0.0
        %668 = vmatpush1.msra.mxu0 %v398
        %669 = vmatprep.subr.mxu0 0.0
        %670 = vmatpush1.msra.mxu0 %v399
        %671 = vmatprep.subr.mxu0 0.0
        %672 = vmatpush1.msra.mxu0 %v400
        %673 = vmatprep.subr.mxu0 0.0
        %674 = vmatpush1.msra.mxu0 %v401
        %675 = vmatprep.subr.mxu0 0.0
        %676 = vmatpush1.msra.mxu0 %v402
        %677 = vmatprep.subr.mxu0 0.0
        %678 = vmatpush1.msra.mxu0 %v403
        %679 = vmatprep.subr.mxu0 0.0
        %680 = vmatpush1.msra.mxu0 %v404
        %681 = vmatprep.subr.mxu0 0.0
        %682 = vmatpush1.msra.mxu0 %v405
        %683 = vmatprep.subr.mxu0 0.0
        %684 = vmatpush1.msra.mxu0 0.0
        %685 = vmatprep.subr.mxu0 0.0
        %686 = vmatpush1.msra.mxu0 0.0
        %687 = vmatprep.subr.mxu0 0.0
        %688 = vmatpush1.msra.mxu0 0.0
        %689 = vmatprep.subr.mxu0 0.0
        %690 = vmatpush1.msra.mxu0 0.0
        %691 = vmatprep.subr.mxu0 0.0
        %692 = vmatpush1.msra.mxu0 0.0
        %693 = vmatprep.subr.mxu0 0.0
        %694 = vmatpush1.msra.mxu0 0.0
        %695 = vmatprep.subr.mxu0 0.0
        %696 = vmatpush1.msra.mxu0 0.0
        %697 = vmatprep.subr.mxu0 0.0
        %698 = vmatpush1.msra.mxu0 0.0
        %699 = vmatprep.subr.mxu0 0.0
        %700 = vmatpush1.msra.mxu0 0.0
        %701 = vmatprep.subr.mxu0 0.0
        %702 = vmatpush1.msra.mxu0 0.0
        %703 = vmatprep.subr.mxu0 0.0
        %704 = vmatpush1.msra.mxu0 0.0
        %705 = vmatprep.subr.mxu0 0.0
        %706 = vmatpush1.msra.mxu0 0.0
        %707 = vmatprep.subr.mxu0 0.0
        %708 = vmatpush1.msra.mxu0 0.0
        %709 = vmatprep.subr.mxu0 0.0
        %710 = vmatpush1.msra.mxu0 0.0
        %711 = vmatprep.subr.mxu0 0.0
        %712 = vmatpush1.msra.mxu0 0.0
        %713 = vmatprep.subr.mxu0 0.0
        %714 = vmatpush1.msra.mxu0 0.0
        %715 = vmatprep.subr.mxu0 0.0
        %716 = vmatpush1.msra.mxu0 0.0
        %717 = vmatprep.subr.mxu0 0.0
        %718 = vmatpush1.msra.mxu0 0.0
        %719 = vmatprep.subr.mxu0 0.0
        %720 = vmatpush1.msra.mxu0 0.0
        %721 = vmatprep.subr.mxu0 0.0
        %722 = vmatpush1.msra.mxu0 0.0
        %723 = vmatprep.subr.mxu0 0.0
        %724 = vmatpush1.msra.mxu0 0.0
        %725 = vmatprep.subr.mxu0 0.0
        %726 = vmatpush1.msra.mxu0 0.0
        %727 = vmatprep.subr.mxu0 0.0
        %728 = vmatpush1.msra.mxu0 0.0
        %729 = vmatprep.subr.mxu0 0.0
        %730 = vmatpush1.msra.mxu0 0.0
        %731 = vmatprep.mubr.f32.mxu0 0.0
        %732 = vmatmul.mubr.f32.gmra.mrb[0].mxu0 %v644
        %v733 = vpop.f32.mrb[0].mxu0
        %v734 = vadd.f32 %v605, %v733
        %v735 = vpop.f32.mrb[0].mxu0
        %736 = vmatprep.mubr.f32.mxu0 0.0
        %737 = vmatmul.mubr.f32.gmra.mrb[0].mxu0 %v647
        %v738 = vpop.f32.mrb[0].mxu0
        %v739 = vadd.f32 %v610, %v738
        %v740 = vpop.f32.mrb[0].mxu0
        %741 = vmatprep.mubr.f32.mxu0 0.0
        %742 = vmatmul.mubr.f32.gmra.mrb[0].mxu0 %v650
        %v743 = vpop.f32.mrb[0].mxu0
        %v744 = vadd.f32 %v615, %v743
        %v745 = vpop.f32.mrb[0].mxu0
        %746 = vmatprep.mubr.f32.mxu0 0.0
        %747 = vmatmul.mubr.f32.gmra.mrb[0].mxu0 %v653
        %v748 = vpop.f32.mrb[0].mxu0
        %v749 = vadd.f32 %v620, %v748
        %v750 = vpop.f32.mrb[0].mxu0
        %751 = vmatprep.mubr.f32.mxu0 0.0
        %752 = vmatmul.mubr.f32.gmra.mrb[0].mxu0 %v656
        %v753 = vpop.f32.mrb[0].mxu0
        %v754 = vadd.f32 %v625, %v753
        %v755 = vpop.f32.mrb[0].mxu0
        %756 = vmatprep.mubr.f32.mxu0 0.0
        %757 = vmatmul.mubr.f32.gmra.mrb[0].mxu0 %v659
        %v758 = vpop.f32.mrb[0].mxu0
        %v759 = vadd.f32 %v630, %v758
        %v760 = vpop.f32.mrb[0].mxu0
        %761 = vmatprep.mubr.f32.mxu0 0.0
        %762 = vmatmul.mubr.f32.gmra.mrb[0].mxu0 %v662
        %v763 = vpop.f32.mrb[0].mxu0
        %v764 = vadd.f32 %v635, %v763
        %v765 = vpop.f32.mrb[0].mxu0
        %766 = vmatprep.mubr.f32.mxu0 0.0
        %767 = vmatmul.mubr.f32.gmra.mrb[0].mxu0 %v665
        %v768 = vpop.f32.mrb[0].mxu0
        %v769 = vadd.f32 %v640, %v768
        %v770 = vpop.f32.mrb[0].mxu0
        %771 = vdwg.mxu0
        %s772 = scalar_lea.vmem %s1, 128
        %v773 = vld [vmem:[%s772] sm:$0xff]
        %v774 = vld [vmem:[%s772 + $0x8] sm:$0xff]
        %v775 = vld [vmem:[%s772 + $0x10] sm:$0xff]
        %v776 = vld [vmem:[%s772 + $0x18] sm:$0xff]
        %v777 = vld [vmem:[%s772 + $0x20] sm:$0xff]
        %v778 = vld [vmem:[%s772 + $0x28] sm:$0xff]
        %v779 = vld [vmem:[%s772 + $0x30] sm:$0xff]
        %v780 = vld [vmem:[%s772 + $0x38] sm:$0xff]
        %v782 = vsel %vm513, %v773, 0
        %v785 = vsel %vm513, %v774, 0
        %v788 = vsel %vm513, %v775, 0
        %v791 = vsel %vm513, %v776, 0
        %v794 = vsel %vm513, %v777, 0
        %v797 = vsel %vm513, %v778, 0
        %v800 = vsel %vm513, %v779, 0
        %v803 = vsel %vm513, %v780, 0
        %805 = vmatprep.subr.mxu0 0.0
        %806 = vmatpush1.msra.mxu0 %v488
        %807 = vmatprep.subr.mxu0 0.0
        %808 = vmatpush1.msra.mxu0 %v489
        %809 = vmatprep.subr.mxu0 0.0
        %810 = vmatpush1.msra.mxu0 %v490
        %811 = vmatprep.subr.mxu0 0.0
        %812 = vmatpush1.msra.mxu0 %v491
        %813 = vmatprep.subr.mxu0 0.0
        %814 = vmatpush1.msra.mxu0 %v492
        %815 = vmatprep.subr.mxu0 0.0
        %816 = vmatpush1.msra.mxu0 %v493
        %817 = vmatprep.subr.mxu0 0.0
        %818 = vmatpush1.msra.mxu0 %v494
        %819 = vmatprep.subr.mxu0 0.0
        %820 = vmatpush1.msra.mxu0 %v495
        %821 = vmatprep.subr.mxu0 0.0
        %822 = vmatpush1.msra.mxu0 0.0
        %823 = vmatprep.subr.mxu0 0.0
        %824 = vmatpush1.msra.mxu0 0.0
        %825 = vmatprep.subr.mxu0 0.0
        %826 = vmatpush1.msra.mxu0 0.0
        %827 = vmatprep.subr.mxu0 0.0
        %828 = vmatpush1.msra.mxu0 0.0
        %829 = vmatprep.subr.mxu0 0.0
        %830 = vmatpush1.msra.mxu0 0.0
        %831 = vmatprep.subr.mxu0 0.0
        %832 = vmatpush1.msra.mxu0 0.0
        %833 = vmatprep.subr.mxu0 0.0
        %834 = vmatpush1.msra.mxu0 0.0
        %835 = vmatprep.subr.mxu0 0.0
        %836 = vmatpush1.msra.mxu0 0.0
        %837 = vmatprep.subr.mxu0 0.0
        %838 = vmatpush1.msra.mxu0 0.0
        %839 = vmatprep.subr.mxu0 0.0
        %840 = vmatpush1.msra.mxu0 0.0
        %841 = vmatprep.subr.mxu0 0.0
        %842 = vmatpush1.msra.mxu0 0.0
        %843 = vmatprep.subr.mxu0 0.0
        %844 = vmatpush1.msra.mxu0 0.0
        %845 = vmatprep.subr.mxu0 0.0
        %846 = vmatpush1.msra.mxu0 0.0
        %847 = vmatprep.subr.mxu0 0.0
        %848 = vmatpush1.msra.mxu0 0.0
        %849 = vmatprep.subr.mxu0 0.0
        %850 = vmatpush1.msra.mxu0 0.0
        %851 = vmatprep.subr.mxu0 0.0
        %852 = vmatpush1.msra.mxu0 0.0
        %853 = vmatprep.subr.mxu0 0.0
        %854 = vmatpush1.msra.mxu0 0.0
        %855 = vmatprep.subr.mxu0 0.0
        %856 = vmatpush1.msra.mxu0 0.0
        %857 = vmatprep.subr.mxu0 0.0
        %858 = vmatpush1.msra.mxu0 0.0
        %859 = vmatprep.subr.mxu0 0.0
        %860 = vmatpush1.msra.mxu0 0.0
        %861 = vmatprep.subr.mxu0 0.0
        %862 = vmatpush1.msra.mxu0 0.0
        %863 = vmatprep.subr.mxu0 0.0
        %864 = vmatpush1.msra.mxu0 0.0
        %865 = vmatprep.subr.mxu0 0.0
        %866 = vmatpush1.msra.mxu0 0.0
        %867 = vmatprep.subr.mxu0 0.0
        %868 = vmatpush1.msra.mxu0 0.0
        %869 = vmatprep.mubr.f32.mxu0 0.0
        %870 = vmatmul.mubr.f32.gmra.mrb[0].mxu0 %v782
        %v871 = vpop.f32.mrb[0].mxu0
        %v872 = vadd.f32 0.0, %v871
        %v873 = vpop.f32.mrb[0].mxu0
        %874 = vmatprep.mubr.f32.mxu0 0.0
        %875 = vmatmul.mubr.f32.gmra.mrb[0].mxu0 %v785
        %v876 = vpop.f32.mrb[0].mxu0
        %v877 = vadd.f32 0.0, %v876
        %v878 = vpop.f32.mrb[0].mxu0
        %879 = vmatprep.mubr.f32.mxu0 0.0
        %880 = vmatmul.mubr.f32.gmra.mrb[0].mxu0 %v788
        %v881 = vpop.f32.mrb[0].mxu0
        %v882 = vadd.f32 0.0, %v881
        %v883 = vpop.f32.mrb[0].mxu0
        %884 = vmatprep.mubr.f32.mxu0 0.0
        %885 = vmatmul.mubr.f32.gmra.mrb[0].mxu0 %v791
        %v886 = vpop.f32.mrb[0].mxu0
        %v887 = vadd.f32 0.0, %v886
        %v888 = vpop.f32.mrb[0].mxu0
        %889 = vmatprep.mubr.f32.mxu0 0.0
        %890 = vmatmul.mubr.f32.gmra.mrb[0].mxu0 %v794
        %v891 = vpop.f32.mrb[0].mxu0
        %v892 = vadd.f32 0.0, %v891
        %v893 = vpop.f32.mrb[0].mxu0
        %894 = vmatprep.mubr.f32.mxu0 0.0
        %895 = vmatmul.mubr.f32.gmra.mrb[0].mxu0 %v797
        %v896 = vpop.f32.mrb[0].mxu0
        %v897 = vadd.f32 0.0, %v896
        %v898 = vpop.f32.mrb[0].mxu0
        %899 = vmatprep.mubr.f32.mxu0 0.0
        %900 = vmatmul.mubr.f32.gmra.mrb[0].mxu0 %v800
        %v901 = vpop.f32.mrb[0].mxu0
        %v902 = vadd.f32 0.0, %v901
        %v903 = vpop.f32.mrb[0].mxu0
        %904 = vmatprep.mubr.f32.mxu0 0.0
        %905 = vmatmul.mubr.f32.gmra.mrb[0].mxu0 %v803
        %v906 = vpop.f32.mrb[0].mxu0
        %v907 = vadd.f32 0.0, %v906
        %v908 = vpop.f32.mrb[0].mxu0
        %909 = vdwg.mxu0
        %v910 = vadd.f32 %v734, %v872
        %v911 = vadd.f32 %v739, %v877
        %v912 = vadd.f32 %v744, %v882
        %v913 = vadd.f32 %v749, %v887
        %v914 = vadd.f32 %v754, %v892
        %v915 = vadd.f32 %v759, %v897
        %v916 = vadd.f32 %v764, %v902
        %v917 = vadd.f32 %v769, %v907
        %v918 = vmax.f32 %v910, 0.0
        %v919 = vmax.f32 %v911, 0.0
        %v920 = vmax.f32 %v912, 0.0
        %v921 = vmax.f32 %v913, 0.0
        %v922 = vmax.f32 %v914, 0.0
        %v923 = vmax.f32 %v915, 0.0
        %v924 = vmax.f32 %v916, 0.0
        %v925 = vmax.f32 %v917, 0.0
        %934 = vrot.lane.b32.xlu0 %v918, 1
        %v935 = vpop.permute.xlu0 %934
        %936 = vrot.lane.b32.xlu0 %v919, 1
        %v937 = vpop.permute.xlu0 %936
        %938 = vrot.lane.b32.xlu0 %v920, 1
        %v939 = vpop.permute.xlu0 %938
        %940 = vrot.lane.b32.xlu0 %v921, 1
        %v941 = vpop.permute.xlu0 %940
        %942 = vrot.lane.b32.xlu0 %v922, 1
        %v943 = vpop.permute.xlu0 %942
        %944 = vrot.lane.b32.xlu0 %v923, 1
        %v945 = vpop.permute.xlu0 %944
        %946 = vrot.lane.b32.xlu0 %v924, 1
        %v947 = vpop.permute.xlu0 %946
        %948 = vrot.lane.b32.xlu0 %v925, 1
        %v949 = vpop.permute.xlu0 %948
        %v958 = vsel %vm438, 0.0, %v935
        %v959 = vsel %vm438, 0.0, %v937
        %v960 = vsel %vm438, 0.0, %v939
        %v961 = vsel %vm438, 0.0, %v941
        %v962 = vsel %vm438, 0.0, %v943
        %v963 = vsel %vm438, 0.0, %v945
        %v964 = vsel %vm438, 0.0, %v947
        %v965 = vsel %vm438, 0.0, %v949
        %v966 = vmul.f32 %v958, %v394
        %v967 = vmul.f32 %v959, %v394
        %v968 = vmul.f32 %v960, %v394
        %v969 = vmul.f32 %v961, %v394
        %v970 = vmul.f32 %v962, %v394
        %v971 = vmul.f32 %v963, %v394
        %v972 = vmul.f32 %v964, %v394
        %v973 = vmul.f32 %v965, %v394
        %974 = vrot.lane.b32.xlu0 %v918, 127
        %v975 = vpop.permute.xlu0 %974
        %976 = vrot.lane.b32.xlu0 %v919, 127
        %v977 = vpop.permute.xlu0 %976
        %978 = vrot.lane.b32.xlu0 %v920, 127
        %v979 = vpop.permute.xlu0 %978
        %980 = vrot.lane.b32.xlu0 %v921, 127
        %v981 = vpop.permute.xlu0 %980
        %982 = vrot.lane.b32.xlu0 %v922, 127
        %v983 = vpop.permute.xlu0 %982
        %984 = vrot.lane.b32.xlu0 %v923, 127
        %v985 = vpop.permute.xlu0 %984
        %986 = vrot.lane.b32.xlu0 %v924, 127
        %v987 = vpop.permute.xlu0 %986
        %988 = vrot.lane.b32.xlu0 %v925, 127
        %v989 = vpop.permute.xlu0 %988
        %v998 = vsel %vm479, %v975, 0.0
        %v999 = vsel %vm479, %v977, 0.0
        %v1000 = vsel %vm479, %v979, 0.0
        %v1001 = vsel %vm479, %v981, 0.0
        %v1002 = vsel %vm479, %v983, 0.0
        %v1003 = vsel %vm479, %v985, 0.0
        %v1004 = vsel %vm479, %v987, 0.0
        %v1005 = vsel %vm479, %v989, 0.0
        %v1006 = vmul.f32 %v998, %v397
        %v1007 = vmul.f32 %v999, %v397
        %v1008 = vmul.f32 %v1000, %v397
        %v1009 = vmul.f32 %v1001, %v397
        %v1010 = vmul.f32 %v1002, %v397
        %v1011 = vmul.f32 %v1003, %v397
        %v1012 = vmul.f32 %v1004, %v397
        %v1013 = vmul.f32 %v1005, %v397
        %s1014 = scalar_lea.vmem %s2, 64
        %v1015 = vld [vmem:[%s1014] sm:$0xff]
        %v1016 = vld [vmem:[%s1014 + $0x8] sm:$0xff]
        %v1017 = vld [vmem:[%s1014 + $0x10] sm:$0xff]
        %v1018 = vld [vmem:[%s1014 + $0x18] sm:$0xff]
        %v1019 = vld [vmem:[%s1014 + $0x20] sm:$0xff]
        %v1020 = vld [vmem:[%s1014 + $0x28] sm:$0xff]
        %v1021 = vld [vmem:[%s1014 + $0x30] sm:$0xff]
        %v1022 = vld [vmem:[%s1014 + $0x38] sm:$0xff]
        %v1023 = vld [vmem:[%s2] sm:$0xff]
        %v1024 = vld [vmem:[%s2 + $0x8] sm:$0xff]
        %v1025 = vld [vmem:[%s2 + $0x10] sm:$0xff]
        %v1026 = vld [vmem:[%s2 + $0x18] sm:$0xff]
        %v1027 = vld [vmem:[%s2 + $0x20] sm:$0xff]
        %v1028 = vld [vmem:[%s2 + $0x28] sm:$0xff]
        %v1029 = vld [vmem:[%s2 + $0x30] sm:$0xff]
        %v1030 = vld [vmem:[%s2 + $0x38] sm:$0xff]
        %v1032 = vsel %vm513, %v1023, 0
        %v1035 = vsel %vm513, %v1024, 0
        %v1038 = vsel %vm513, %v1025, 0
        %v1041 = vsel %vm513, %v1026, 0
        %v1044 = vsel %vm513, %v1027, 0
        %v1047 = vsel %vm513, %v1028, 0
        %v1050 = vsel %vm513, %v1029, 0
        %v1053 = vsel %vm513, %v1030, 0
        %1055 = vmatprep.subr.mxu0 0.0
        %1056 = vmatpush1.msra.mxu0 %v966
        %1057 = vmatprep.subr.mxu0 0.0
        %1058 = vmatpush1.msra.mxu0 %v967
        %1059 = vmatprep.subr.mxu0 0.0
        %1060 = vmatpush1.msra.mxu0 %v968
        %1061 = vmatprep.subr.mxu0 0.0
        %1062 = vmatpush1.msra.mxu0 %v969
        %1063 = vmatprep.subr.mxu0 0.0
        %1064 = vmatpush1.msra.mxu0 %v970
        %1065 = vmatprep.subr.mxu0 0.0
        %1066 = vmatpush1.msra.mxu0 %v971
        %1067 = vmatprep.subr.mxu0 0.0
        %1068 = vmatpush1.msra.mxu0 %v972
        %1069 = vmatprep.subr.mxu0 0.0
        %1070 = vmatpush1.msra.mxu0 %v973
        %1071 = vmatprep.subr.mxu0 0.0
        %1072 = vmatpush1.msra.mxu0 0.0
        %1073 = vmatprep.subr.mxu0 0.0
        %1074 = vmatpush1.msra.mxu0 0.0
        %1075 = vmatprep.subr.mxu0 0.0
        %1076 = vmatpush1.msra.mxu0 0.0
        %1077 = vmatprep.subr.mxu0 0.0
        %1078 = vmatpush1.msra.mxu0 0.0
        %1079 = vmatprep.subr.mxu0 0.0
        %1080 = vmatpush1.msra.mxu0 0.0
        %1081 = vmatprep.subr.mxu0 0.0
        %1082 = vmatpush1.msra.mxu0 0.0
        %1083 = vmatprep.subr.mxu0 0.0
        %1084 = vmatpush1.msra.mxu0 0.0
        %1085 = vmatprep.subr.mxu0 0.0
        %1086 = vmatpush1.msra.mxu0 0.0
        %1087 = vmatprep.subr.mxu0 0.0
        %1088 = vmatpush1.msra.mxu0 0.0
        %1089 = vmatprep.subr.mxu0 0.0
        %1090 = vmatpush1.msra.mxu0 0.0
        %1091 = vmatprep.subr.mxu0 0.0
        %1092 = vmatpush1.msra.mxu0 0.0
        %1093 = vmatprep.subr.mxu0 0.0
        %1094 = vmatpush1.msra.mxu0 0.0
        %1095 = vmatprep.subr.mxu0 0.0
        %1096 = vmatpush1.msra.mxu0 0.0
        %1097 = vmatprep.subr.mxu0 0.0
        %1098 = vmatpush1.msra.mxu0 0.0
        %1099 = vmatprep.subr.mxu0 0.0
        %1100 = vmatpush1.msra.mxu0 0.0
        %1101 = vmatprep.subr.mxu0 0.0
        %1102 = vmatpush1.msra.mxu0 0.0
        %1103 = vmatprep.subr.mxu0 0.0
        %1104 = vmatpush1.msra.mxu0 0.0
        %1105 = vmatprep.subr.mxu0 0.0
        %1106 = vmatpush1.msra.mxu0 0.0
        %1107 = vmatprep.subr.mxu0 0.0
        %1108 = vmatpush1.msra.mxu0 0.0
        %1109 = vmatprep.subr.mxu0 0.0
        %1110 = vmatpush1.msra.mxu0 0.0
        %1111 = vmatprep.subr.mxu0 0.0
        %1112 = vmatpush1.msra.mxu0 0.0
        %1113 = vmatprep.subr.mxu0 0.0
        %1114 = vmatpush1.msra.mxu0 0.0
        %1115 = vmatprep.subr.mxu0 0.0
        %1116 = vmatpush1.msra.mxu0 0.0
        %1117 = vmatprep.subr.mxu0 0.0
        %1118 = vmatpush1.msra.mxu0 0.0
        %1119 = vmatprep.mubr.f32.mxu0 0.0
        %1120 = vmatmul.mubr.f32.gmra.mrb[0].mxu0 %v1032
        %v1121 = vpop.f32.mrb[0].mxu0
        %v1122 = vadd.f32 0.0, %v1121
        %v1123 = vpop.f32.mrb[0].mxu0
        %1124 = vmatprep.mubr.f32.mxu0 0.0
        %1125 = vmatmul.mubr.f32.gmra.mrb[0].mxu0 %v1035
        %v1126 = vpop.f32.mrb[0].mxu0
        %v1127 = vadd.f32 0.0, %v1126
        %v1128 = vpop.f32.mrb[0].mxu0
        %1129 = vmatprep.mubr.f32.mxu0 0.0
        %1130 = vmatmul.mubr.f32.gmra.mrb[0].mxu0 %v1038
        %v1131 = vpop.f32.mrb[0].mxu0
        %v1132 = vadd.f32 0.0, %v1131
        %v1133 = vpop.f32.mrb[0].mxu0
        %1134 = vmatprep.mubr.f32.mxu0 0.0
        %1135 = vmatmul.mubr.f32.gmra.mrb[0].mxu0 %v1041
        %v1136 = vpop.f32.mrb[0].mxu0
        %v1137 = vadd.f32 0.0, %v1136
        %v1138 = vpop.f32.mrb[0].mxu0
        %1139 = vmatprep.mubr.f32.mxu0 0.0
        %1140 = vmatmul.mubr.f32.gmra.mrb[0].mxu0 %v1044
        %v1141 = vpop.f32.mrb[0].mxu0
        %v1142 = vadd.f32 0.0, %v1141
        %v1143 = vpop.f32.mrb[0].mxu0
        %1144 = vmatprep.mubr.f32.mxu0 0.0
        %1145 = vmatmul.mubr.f32.gmra.mrb[0].mxu0 %v1047
        %v1146 = vpop.f32.mrb[0].mxu0
        %v1147 = vadd.f32 0.0, %v1146
        %v1148 = vpop.f32.mrb[0].mxu0
        %1149 = vmatprep.mubr.f32.mxu0 0.0
        %1150 = vmatmul.mubr.f32.gmra.mrb[0].mxu0 %v1050
        %v1151 = vpop.f32.mrb[0].mxu0
        %v1152 = vadd.f32 0.0, %v1151
        %v1153 = vpop.f32.mrb[0].mxu0
        %1154 = vmatprep.mubr.f32.mxu0 0.0
        %1155 = vmatmul.mubr.f32.gmra.mrb[0].mxu0 %v1053
        %v1156 = vpop.f32.mrb[0].mxu0
        %v1157 = vadd.f32 0.0, %v1156
        %v1158 = vpop.f32.mrb[0].mxu0
        %1159 = vdwg.mxu0
        %v1161 = vsel %vm513, %v1015, 0
        %v1164 = vsel %vm513, %v1016, 0
        %v1167 = vsel %vm513, %v1017, 0
        %v1170 = vsel %vm513, %v1018, 0
        %v1173 = vsel %vm513, %v1019, 0
        %v1176 = vsel %vm513, %v1020, 0
        %v1179 = vsel %vm513, %v1021, 0
        %v1182 = vsel %vm513, %v1022, 0
        %1184 = vmatprep.subr.mxu0 0.0
        %1185 = vmatpush1.msra.mxu0 %v918
        %1186 = vmatprep.subr.mxu0 0.0
        %1187 = vmatpush1.msra.mxu0 %v919
        %1188 = vmatprep.subr.mxu0 0.0
        %1189 = vmatpush1.msra.mxu0 %v920
        %1190 = vmatprep.subr.mxu0 0.0
        %1191 = vmatpush1.msra.mxu0 %v921
        %1192 = vmatprep.subr.mxu0 0.0
        %1193 = vmatpush1.msra.mxu0 %v922
        %1194 = vmatprep.subr.mxu0 0.0
        %1195 = vmatpush1.msra.mxu0 %v923
        %1196 = vmatprep.subr.mxu0 0.0
        %1197 = vmatpush1.msra.mxu0 %v924
        %1198 = vmatprep.subr.mxu0 0.0
        %1199 = vmatpush1.msra.mxu0 %v925
        %1200 = vmatprep.subr.mxu0 0.0
        %1201 = vmatpush1.msra.mxu0 0.0
        %1202 = vmatprep.subr.mxu0 0.0
        %1203 = vmatpush1.msra.mxu0 0.0
        %1204 = vmatprep.subr.mxu0 0.0
        %1205 = vmatpush1.msra.mxu0 0.0
        %1206 = vmatprep.subr.mxu0 0.0
        %1207 = vmatpush1.msra.mxu0 0.0
        %1208 = vmatprep.subr.mxu0 0.0
        %1209 = vmatpush1.msra.mxu0 0.0
        %1210 = vmatprep.subr.mxu0 0.0
        %1211 = vmatpush1.msra.mxu0 0.0
        %1212 = vmatprep.subr.mxu0 0.0
        %1213 = vmatpush1.msra.mxu0 0.0
        %1214 = vmatprep.subr.mxu0 0.0
        %1215 = vmatpush1.msra.mxu0 0.0
        %1216 = vmatprep.subr.mxu0 0.0
        %1217 = vmatpush1.msra.mxu0 0.0
        %1218 = vmatprep.subr.mxu0 0.0
        %1219 = vmatpush1.msra.mxu0 0.0
        %1220 = vmatprep.subr.mxu0 0.0
        %1221 = vmatpush1.msra.mxu0 0.0
        %1222 = vmatprep.subr.mxu0 0.0
        %1223 = vmatpush1.msra.mxu0 0.0
        %1224 = vmatprep.subr.mxu0 0.0
        %1225 = vmatpush1.msra.mxu0 0.0
        %1226 = vmatprep.subr.mxu0 0.0
        %1227 = vmatpush1.msra.mxu0 0.0
        %1228 = vmatprep.subr.mxu0 0.0
        %1229 = vmatpush1.msra.mxu0 0.0
        %1230 = vmatprep.subr.mxu0 0.0
        %1231 = vmatpush1.msra.mxu0 0.0
        %1232 = vmatprep.subr.mxu0 0.0
        %1233 = vmatpush1.msra.mxu0 0.0
        %1234 = vmatprep.subr.mxu0 0.0
        %1235 = vmatpush1.msra.mxu0 0.0
        %1236 = vmatprep.subr.mxu0 0.0
        %1237 = vmatpush1.msra.mxu0 0.0
        %1238 = vmatprep.subr.mxu0 0.0
        %1239 = vmatpush1.msra.mxu0 0.0
        %1240 = vmatprep.subr.mxu0 0.0
        %1241 = vmatpush1.msra.mxu0 0.0
        %1242 = vmatprep.subr.mxu0 0.0
        %1243 = vmatpush1.msra.mxu0 0.0
        %1244 = vmatprep.subr.mxu0 0.0
        %1245 = vmatpush1.msra.mxu0 0.0
        %1246 = vmatprep.subr.mxu0 0.0
        %1247 = vmatpush1.msra.mxu0 0.0
        %1248 = vmatprep.mubr.f32.mxu0 0.0
        %1249 = vmatmul.mubr.f32.gmra.mrb[0].mxu0 %v1161
        %v1250 = vpop.f32.mrb[0].mxu0
        %v1251 = vadd.f32 %v1122, %v1250
        %v1252 = vpop.f32.mrb[0].mxu0
        %1253 = vmatprep.mubr.f32.mxu0 0.0
        %1254 = vmatmul.mubr.f32.gmra.mrb[0].mxu0 %v1164
        %v1255 = vpop.f32.mrb[0].mxu0
        %v1256 = vadd.f32 %v1127, %v1255
        %v1257 = vpop.f32.mrb[0].mxu0
        %1258 = vmatprep.mubr.f32.mxu0 0.0
        %1259 = vmatmul.mubr.f32.gmra.mrb[0].mxu0 %v1167
        %v1260 = vpop.f32.mrb[0].mxu0
        %v1261 = vadd.f32 %v1132, %v1260
        %v1262 = vpop.f32.mrb[0].mxu0
        %1263 = vmatprep.mubr.f32.mxu0 0.0
        %1264 = vmatmul.mubr.f32.gmra.mrb[0].mxu0 %v1170
        %v1265 = vpop.f32.mrb[0].mxu0
        %v1266 = vadd.f32 %v1137, %v1265
        %v1267 = vpop.f32.mrb[0].mxu0
        %1268 = vmatprep.mubr.f32.mxu0 0.0
        %1269 = vmatmul.mubr.f32.gmra.mrb[0].mxu0 %v1173
        %v1270 = vpop.f32.mrb[0].mxu0
        %v1271 = vadd.f32 %v1142, %v1270
        %v1272 = vpop.f32.mrb[0].mxu0
        %1273 = vmatprep.mubr.f32.mxu0 0.0
        %1274 = vmatmul.mubr.f32.gmra.mrb[0].mxu0 %v1176
        %v1275 = vpop.f32.mrb[0].mxu0
        %v1276 = vadd.f32 %v1147, %v1275
        %v1277 = vpop.f32.mrb[0].mxu0
        %1278 = vmatprep.mubr.f32.mxu0 0.0
        %1279 = vmatmul.mubr.f32.gmra.mrb[0].mxu0 %v1179
        %v1280 = vpop.f32.mrb[0].mxu0
        %v1281 = vadd.f32 %v1152, %v1280
        %v1282 = vpop.f32.mrb[0].mxu0
        %1283 = vmatprep.mubr.f32.mxu0 0.0
        %1284 = vmatmul.mubr.f32.gmra.mrb[0].mxu0 %v1182
        %v1285 = vpop.f32.mrb[0].mxu0
        %v1286 = vadd.f32 %v1157, %v1285
        %v1287 = vpop.f32.mrb[0].mxu0
        %1288 = vdwg.mxu0
        %s1289 = scalar_lea.vmem %s2, 128
        %v1290 = vld [vmem:[%s1289] sm:$0xff]
        %v1291 = vld [vmem:[%s1289 + $0x8] sm:$0xff]
        %v1292 = vld [vmem:[%s1289 + $0x10] sm:$0xff]
        %v1293 = vld [vmem:[%s1289 + $0x18] sm:$0xff]
        %v1294 = vld [vmem:[%s1289 + $0x20] sm:$0xff]
        %v1295 = vld [vmem:[%s1289 + $0x28] sm:$0xff]
        %v1296 = vld [vmem:[%s1289 + $0x30] sm:$0xff]
        %v1297 = vld [vmem:[%s1289 + $0x38] sm:$0xff]
        %v1299 = vsel %vm513, %v1290, 0
        %v1302 = vsel %vm513, %v1291, 0
        %v1305 = vsel %vm513, %v1292, 0
        %v1308 = vsel %vm513, %v1293, 0
        %v1311 = vsel %vm513, %v1294, 0
        %v1314 = vsel %vm513, %v1295, 0
        %v1317 = vsel %vm513, %v1296, 0
        %v1320 = vsel %vm513, %v1297, 0
        %1322 = vmatprep.subr.mxu0 0.0
        %1323 = vmatpush1.msra.mxu0 %v1006
        %1324 = vmatprep.subr.mxu0 0.0
        %1325 = vmatpush1.msra.mxu0 %v1007
        %1326 = vmatprep.subr.mxu0 0.0
        %1327 = vmatpush1.msra.mxu0 %v1008
        %1328 = vmatprep.subr.mxu0 0.0
        %1329 = vmatpush1.msra.mxu0 %v1009
        %1330 = vmatprep.subr.mxu0 0.0
        %1331 = vmatpush1.msra.mxu0 %v1010
        %1332 = vmatprep.subr.mxu0 0.0
        %1333 = vmatpush1.msra.mxu0 %v1011
        %1334 = vmatprep.subr.mxu0 0.0
        %1335 = vmatpush1.msra.mxu0 %v1012
        %1336 = vmatprep.subr.mxu0 0.0
        %1337 = vmatpush1.msra.mxu0 %v1013
        %1338 = vmatprep.subr.mxu0 0.0
        %1339 = vmatpush1.msra.mxu0 0.0
        %1340 = vmatprep.subr.mxu0 0.0
        %1341 = vmatpush1.msra.mxu0 0.0
        %1342 = vmatprep.subr.mxu0 0.0
        %1343 = vmatpush1.msra.mxu0 0.0
        %1344 = vmatprep.subr.mxu0 0.0
        %1345 = vmatpush1.msra.mxu0 0.0
        %1346 = vmatprep.subr.mxu0 0.0
        %1347 = vmatpush1.msra.mxu0 0.0
        %1348 = vmatprep.subr.mxu0 0.0
        %1349 = vmatpush1.msra.mxu0 0.0
        %1350 = vmatprep.subr.mxu0 0.0
        %1351 = vmatpush1.msra.mxu0 0.0
        %1352 = vmatprep.subr.mxu0 0.0
        %1353 = vmatpush1.msra.mxu0 0.0
        %1354 = vmatprep.subr.mxu0 0.0
        %1355 = vmatpush1.msra.mxu0 0.0
        %1356 = vmatprep.subr.mxu0 0.0
        %1357 = vmatpush1.msra.mxu0 0.0
        %1358 = vmatprep.subr.mxu0 0.0
        %1359 = vmatpush1.msra.mxu0 0.0
        %1360 = vmatprep.subr.mxu0 0.0
        %1361 = vmatpush1.msra.mxu0 0.0
        %1362 = vmatprep.subr.mxu0 0.0
        %1363 = vmatpush1.msra.mxu0 0.0
        %1364 = vmatprep.subr.mxu0 0.0
        %1365 = vmatpush1.msra.mxu0 0.0
        %1366 = vmatprep.subr.mxu0 0.0
        %1367 = vmatpush1.msra.mxu0 0.0
        %1368 = vmatprep.subr.mxu0 0.0
        %1369 = vmatpush1.msra.mxu0 0.0
        %1370 = vmatprep.subr.mxu0 0.0
        %1371 = vmatpush1.msra.mxu0 0.0
        %1372 = vmatprep.subr.mxu0 0.0
        %1373 = vmatpush1.msra.mxu0 0.0
        %1374 = vmatprep.subr.mxu0 0.0
        %1375 = vmatpush1.msra.mxu0 0.0
        %1376 = vmatprep.subr.mxu0 0.0
        %1377 = vmatpush1.msra.mxu0 0.0
        %1378 = vmatprep.subr.mxu0 0.0
        %1379 = vmatpush1.msra.mxu0 0.0
        %1380 = vmatprep.subr.mxu0 0.0
        %1381 = vmatpush1.msra.mxu0 0.0
        %1382 = vmatprep.subr.mxu0 0.0
        %1383 = vmatpush1.msra.mxu0 0.0
        %1384 = vmatprep.subr.mxu0 0.0
        %1385 = vmatpush1.msra.mxu0 0.0
        %1386 = vmatprep.mubr.f32.mxu0 0.0
        %1387 = vmatmul.mubr.f32.gmra.mrb[0].mxu0 %v1299
        %v1388 = vpop.f32.mrb[0].mxu0
        %v1389 = vadd.f32 0.0, %v1388
        %v1390 = vpop.f32.mrb[0].mxu0
        %1391 = vmatprep.mubr.f32.mxu0 0.0
        %1392 = vmatmul.mubr.f32.gmra.mrb[0].mxu0 %v1302
        %v1393 = vpop.f32.mrb[0].mxu0
        %v1394 = vadd.f32 0.0, %v1393
        %v1395 = vpop.f32.mrb[0].mxu0
        %1396 = vmatprep.mubr.f32.mxu0 0.0
        %1397 = vmatmul.mubr.f32.gmra.mrb[0].mxu0 %v1305
        %v1398 = vpop.f32.mrb[0].mxu0
        %v1399 = vadd.f32 0.0, %v1398
        %v1400 = vpop.f32.mrb[0].mxu0
        %1401 = vmatprep.mubr.f32.mxu0 0.0
        %1402 = vmatmul.mubr.f32.gmra.mrb[0].mxu0 %v1308
        %v1403 = vpop.f32.mrb[0].mxu0
        %v1404 = vadd.f32 0.0, %v1403
        %v1405 = vpop.f32.mrb[0].mxu0
        %1406 = vmatprep.mubr.f32.mxu0 0.0
        %1407 = vmatmul.mubr.f32.gmra.mrb[0].mxu0 %v1311
        %v1408 = vpop.f32.mrb[0].mxu0
        %v1409 = vadd.f32 0.0, %v1408
        %v1410 = vpop.f32.mrb[0].mxu0
        %1411 = vmatprep.mubr.f32.mxu0 0.0
        %1412 = vmatmul.mubr.f32.gmra.mrb[0].mxu0 %v1314
        %v1413 = vpop.f32.mrb[0].mxu0
        %v1414 = vadd.f32 0.0, %v1413
        %v1415 = vpop.f32.mrb[0].mxu0
        %1416 = vmatprep.mubr.f32.mxu0 0.0
        %1417 = vmatmul.mubr.f32.gmra.mrb[0].mxu0 %v1317
        %v1418 = vpop.f32.mrb[0].mxu0
        %v1419 = vadd.f32 0.0, %v1418
        %v1420 = vpop.f32.mrb[0].mxu0
        %1421 = vmatprep.mubr.f32.mxu0 0.0
        %1422 = vmatmul.mubr.f32.gmra.mrb[0].mxu0 %v1320
        %v1423 = vpop.f32.mrb[0].mxu0
        %v1424 = vadd.f32 0.0, %v1423
        %v1425 = vpop.f32.mrb[0].mxu0
        %1426 = vdwg.mxu0
        %v1427 = vadd.f32 %v1251, %v1389
        %v1428 = vadd.f32 %v1256, %v1394
        %v1429 = vadd.f32 %v1261, %v1399
        %v1430 = vadd.f32 %v1266, %v1404
        %v1431 = vadd.f32 %v1271, %v1409
        %v1432 = vadd.f32 %v1276, %v1414
        %v1433 = vadd.f32 %v1281, %v1419
        %v1434 = vadd.f32 %v1286, %v1424
        %v1435 = vld [vmem:[%s7] sm:$0xff]
        %v1436 = vld [vmem:[%s7 + $0x8] sm:$0xff]
        %v1437 = vld [vmem:[%s7 + $0x10] sm:$0xff]
        %v1438 = vld [vmem:[%s7 + $0x18] sm:$0xff]
        %v1439 = vld [vmem:[%s7 + $0x20] sm:$0xff]
        %v1440 = vld [vmem:[%s7 + $0x28] sm:$0xff]
        %v1441 = vld [vmem:[%s7 + $0x30] sm:$0xff]
        %v1442 = vld [vmem:[%s7 + $0x38] sm:$0xff]
        %v1443 = vld [vmem:[%s7 + $0x40] sm:$0xff]
        %v1444 = vld [vmem:[%s7 + $0x48] sm:$0xff]
        %v1445 = vld [vmem:[%s7 + $0x50] sm:$0xff]
        %v1446 = vld [vmem:[%s7 + $0x58] sm:$0xff]
        %v1447 = vld [vmem:[%s7 + $0x60] sm:$0xff]
        %v1448 = vld [vmem:[%s7 + $0x68] sm:$0xff]
        %v1449 = vld [vmem:[%s7 + $0x70] sm:$0xff]
        %v1450 = vld [vmem:[%s7 + $0x78] sm:$0xff]
        %1451 = vmatprep.subr.mxu0 0.0
        %1452 = vmatpush1.msra.mxu0 %v1435
        %1453 = vmatprep.subr.mxu0 0.0
        %1454 = vmatpush1.msra.mxu0 %v1436
        %1455 = vmatprep.subr.mxu0 0.0
        %1456 = vmatpush1.msra.mxu0 %v1437
        %1457 = vmatprep.subr.mxu0 0.0
        %1458 = vmatpush1.msra.mxu0 %v1438
        %1459 = vmatprep.subr.mxu0 0.0
        %1460 = vmatpush1.msra.mxu0 %v1439
        %1461 = vmatprep.subr.mxu0 0.0
        %1462 = vmatpush1.msra.mxu0 %v1440
        %1463 = vmatprep.subr.mxu0 0.0
        %1464 = vmatpush1.msra.mxu0 %v1441
        %1465 = vmatprep.subr.mxu0 0.0
        %1466 = vmatpush1.msra.mxu0 %v1442
        %1467 = vmatprep.subr.mxu0 0.0
        %1468 = vmatpush1.msra.mxu0 %v1443
        %1469 = vmatprep.subr.mxu0 0.0
        %1470 = vmatpush1.msra.mxu0 %v1444
        %1471 = vmatprep.subr.mxu0 0.0
        %1472 = vmatpush1.msra.mxu0 %v1445
        %1473 = vmatprep.subr.mxu0 0.0
        %1474 = vmatpush1.msra.mxu0 %v1446
        %1475 = vmatprep.subr.mxu0 0.0
        %1476 = vmatpush1.msra.mxu0 %v1447
        %1477 = vmatprep.subr.mxu0 0.0
        %1478 = vmatpush1.msra.mxu0 %v1448
        %1479 = vmatprep.subr.mxu0 0.0
        %1480 = vmatpush1.msra.mxu0 %v1449
        %1481 = vmatprep.subr.mxu0 0.0
        %1482 = vmatpush1.msra.mxu0 %v1450
        %1483 = vmatprep.subr.mxu0 0.0
        %1484 = vmatpush1.msra.mxu0 0.0
        %1485 = vmatprep.subr.mxu0 0.0
        %1486 = vmatpush1.msra.mxu0 0.0
        %1487 = vmatprep.subr.mxu0 0.0
        %1488 = vmatpush1.msra.mxu0 0.0
        %1489 = vmatprep.subr.mxu0 0.0
        %1490 = vmatpush1.msra.mxu0 0.0
        %1491 = vmatprep.subr.mxu0 0.0
        %1492 = vmatpush1.msra.mxu0 0.0
        %1493 = vmatprep.subr.mxu0 0.0
        %1494 = vmatpush1.msra.mxu0 0.0
        %1495 = vmatprep.subr.mxu0 0.0
        %1496 = vmatpush1.msra.mxu0 0.0
        %1497 = vmatprep.subr.mxu0 0.0
        %1498 = vmatpush1.msra.mxu0 0.0
        %1499 = vmatprep.subr.mxu0 0.0
        %1500 = vmatpush1.msra.mxu0 0.0
        %1501 = vmatprep.subr.mxu0 0.0
        %1502 = vmatpush1.msra.mxu0 0.0
        %1503 = vmatprep.subr.mxu0 0.0
        %1504 = vmatpush1.msra.mxu0 0.0
        %1505 = vmatprep.subr.mxu0 0.0
        %1506 = vmatpush1.msra.mxu0 0.0
        %1507 = vmatprep.subr.mxu0 0.0
        %1508 = vmatpush1.msra.mxu0 0.0
        %1509 = vmatprep.subr.mxu0 0.0
        %1510 = vmatpush1.msra.mxu0 0.0
        %1511 = vmatprep.subr.mxu0 0.0
        %1512 = vmatpush1.msra.mxu0 0.0
        %1513 = vmatprep.subr.mxu0 0.0
        %1514 = vmatpush1.msra.mxu0 0.0
        %1515 = vmatprep.mubr.f32.mxu0 0.0
        %1516 = vmatmul.mubr.f32.gmra.mrb[0].mxu0 %v1427
        %v1517 = vpop.f32.mrb[0].mxu0
        %v1518 = vadd.f32 0.0, %v1517
        %v1519 = vpop.f32.mrb[0].mxu0
        %1520 = vmatprep.mubr.f32.mxu0 0.0
        %1521 = vmatmul.mubr.f32.gmra.mrb[0].mxu0 %v1428
        %v1522 = vpop.f32.mrb[0].mxu0
        %v1523 = vadd.f32 0.0, %v1522
        %v1524 = vpop.f32.mrb[0].mxu0
        %1525 = vmatprep.mubr.f32.mxu0 0.0
        %1526 = vmatmul.mubr.f32.gmra.mrb[0].mxu0 %v1429
        %v1527 = vpop.f32.mrb[0].mxu0
        %v1528 = vadd.f32 0.0, %v1527
        %v1529 = vpop.f32.mrb[0].mxu0
        %1530 = vmatprep.mubr.f32.mxu0 0.0
        %1531 = vmatmul.mubr.f32.gmra.mrb[0].mxu0 %v1430
        %v1532 = vpop.f32.mrb[0].mxu0
        %v1533 = vadd.f32 0.0, %v1532
        %v1534 = vpop.f32.mrb[0].mxu0
        %1535 = vmatprep.mubr.f32.mxu0 0.0
        %1536 = vmatmul.mubr.f32.gmra.mrb[0].mxu0 %v1431
        %v1537 = vpop.f32.mrb[0].mxu0
        %v1538 = vadd.f32 0.0, %v1537
        %v1539 = vpop.f32.mrb[0].mxu0
        %1540 = vmatprep.mubr.f32.mxu0 0.0
        %1541 = vmatmul.mubr.f32.gmra.mrb[0].mxu0 %v1432
        %v1542 = vpop.f32.mrb[0].mxu0
        %v1543 = vadd.f32 0.0, %v1542
        %v1544 = vpop.f32.mrb[0].mxu0
        %1545 = vmatprep.mubr.f32.mxu0 0.0
        %1546 = vmatmul.mubr.f32.gmra.mrb[0].mxu0 %v1433
        %v1547 = vpop.f32.mrb[0].mxu0
        %v1548 = vadd.f32 0.0, %v1547
        %v1549 = vpop.f32.mrb[0].mxu0
        %1550 = vmatprep.mubr.f32.mxu0 0.0
        %1551 = vmatmul.mubr.f32.gmra.mrb[0].mxu0 %v1434
        %v1552 = vpop.f32.mrb[0].mxu0
        %v1553 = vadd.f32 0.0, %v1552
        %v1554 = vpop.f32.mrb[0].mxu0
        %1555 = vdwg.mxu0
        %1564 = vrot.lane.b32.xlu0 %v1427, 127
        %v1565 = vpop.permute.xlu0 %1564
        %1566 = vrot.lane.b32.xlu0 %v1428, 127
        %v1567 = vpop.permute.xlu0 %1566
        %1568 = vrot.lane.b32.xlu0 %v1429, 127
        %v1569 = vpop.permute.xlu0 %1568
        %1570 = vrot.lane.b32.xlu0 %v1430, 127
        %v1571 = vpop.permute.xlu0 %1570
        %1572 = vrot.lane.b32.xlu0 %v1431, 127
        %v1573 = vpop.permute.xlu0 %1572
        %1574 = vrot.lane.b32.xlu0 %v1432, 127
        %v1575 = vpop.permute.xlu0 %1574
        %1576 = vrot.lane.b32.xlu0 %v1433, 127
        %v1577 = vpop.permute.xlu0 %1576
        %1578 = vrot.lane.b32.xlu0 %v1434, 127
        %v1579 = vpop.permute.xlu0 %1578
        %v1588 = vsel %vm479, %v1565, -3e+38
        %v1589 = vsel %vm479, %v1567, -3e+38
        %v1590 = vsel %vm479, %v1569, -3e+38
        %v1591 = vsel %vm479, %v1571, -3e+38
        %v1592 = vsel %vm479, %v1573, -3e+38
        %v1593 = vsel %vm479, %v1575, -3e+38
        %v1594 = vsel %vm479, %v1577, -3e+38
        %v1595 = vsel %vm479, %v1579, -3e+38
        %v1596 = vmax.f32 %v1427, %v1588
        %v1597 = vmax.f32 %v1428, %v1589
        %v1598 = vmax.f32 %v1429, %v1590
        %v1599 = vmax.f32 %v1430, %v1591
        %v1600 = vmax.f32 %v1431, %v1592
        %v1601 = vmax.f32 %v1432, %v1593
        %v1602 = vmax.f32 %v1433, %v1594
        %v1603 = vmax.f32 %v1434, %v1595
        %1612 = vrot.lane.b32.xlu0 %v1596, 126
        %v1613 = vpop.permute.xlu0 %1612
        %1614 = vrot.lane.b32.xlu0 %v1597, 126
        %v1615 = vpop.permute.xlu0 %1614
        %1616 = vrot.lane.b32.xlu0 %v1598, 126
        %v1617 = vpop.permute.xlu0 %1616
        %1618 = vrot.lane.b32.xlu0 %v1599, 126
        %v1619 = vpop.permute.xlu0 %1618
        %1620 = vrot.lane.b32.xlu0 %v1600, 126
        %v1621 = vpop.permute.xlu0 %1620
        %1622 = vrot.lane.b32.xlu0 %v1601, 126
        %v1623 = vpop.permute.xlu0 %1622
        %1624 = vrot.lane.b32.xlu0 %v1602, 126
        %v1625 = vpop.permute.xlu0 %1624
        %1626 = vrot.lane.b32.xlu0 %v1603, 126
        %v1627 = vpop.permute.xlu0 %1626
        %vm1636 = vcmask 1031168
        %v1637 = vsel %vm1636, %v1613, -3e+38
        %v1638 = vsel %vm1636, %v1615, -3e+38
        %v1639 = vsel %vm1636, %v1617, -3e+38
        %v1640 = vsel %vm1636, %v1619, -3e+38
        %v1641 = vsel %vm1636, %v1621, -3e+38
        %v1642 = vsel %vm1636, %v1623, -3e+38
        %v1643 = vsel %vm1636, %v1625, -3e+38
        %v1644 = vsel %vm1636, %v1627, -3e+38
        %v1645 = vmax.f32 %v1596, %v1637
        %v1646 = vmax.f32 %v1597, %v1638
        %v1647 = vmax.f32 %v1598, %v1639
        %v1648 = vmax.f32 %v1599, %v1640
        %v1649 = vmax.f32 %v1600, %v1641
        %v1650 = vmax.f32 %v1601, %v1642
        %v1651 = vmax.f32 %v1602, %v1643
        %v1652 = vmax.f32 %v1603, %v1644
        %1661 = vrot.lane.b32.xlu0 %v1645, 124
        %v1662 = vpop.permute.xlu0 %1661
        %1663 = vrot.lane.b32.xlu0 %v1646, 124
        %v1664 = vpop.permute.xlu0 %1663
        %1665 = vrot.lane.b32.xlu0 %v1647, 124
        %v1666 = vpop.permute.xlu0 %1665
        %1667 = vrot.lane.b32.xlu0 %v1648, 124
        %v1668 = vpop.permute.xlu0 %1667
        %1669 = vrot.lane.b32.xlu0 %v1649, 124
        %v1670 = vpop.permute.xlu0 %1669
        %1671 = vrot.lane.b32.xlu0 %v1650, 124
        %v1672 = vpop.permute.xlu0 %1671
        %1673 = vrot.lane.b32.xlu0 %v1651, 124
        %v1674 = vpop.permute.xlu0 %1673
        %1675 = vrot.lane.b32.xlu0 %v1652, 124
        %v1676 = vpop.permute.xlu0 %1675
        %vm1685 = vcmask 1014784
        %v1686 = vsel %vm1685, %v1662, -3e+38
        %v1687 = vsel %vm1685, %v1664, -3e+38
        %v1688 = vsel %vm1685, %v1666, -3e+38
        %v1689 = vsel %vm1685, %v1668, -3e+38
        %v1690 = vsel %vm1685, %v1670, -3e+38
        %v1691 = vsel %vm1685, %v1672, -3e+38
        %v1692 = vsel %vm1685, %v1674, -3e+38
        %v1693 = vsel %vm1685, %v1676, -3e+38
        %v1694 = vmax.f32 %v1645, %v1686
        %v1695 = vmax.f32 %v1646, %v1687
        %v1696 = vmax.f32 %v1647, %v1688
        %v1697 = vmax.f32 %v1648, %v1689
        %v1698 = vmax.f32 %v1649, %v1690
        %v1699 = vmax.f32 %v1650, %v1691
        %v1700 = vmax.f32 %v1651, %v1692
        %v1701 = vmax.f32 %v1652, %v1693
        %1710 = vrot.lane.b32.xlu0 %v1694, 120
        %v1711 = vpop.permute.xlu0 %1710
        %1712 = vrot.lane.b32.xlu0 %v1695, 120
        %v1713 = vpop.permute.xlu0 %1712
        %1714 = vrot.lane.b32.xlu0 %v1696, 120
        %v1715 = vpop.permute.xlu0 %1714
        %1716 = vrot.lane.b32.xlu0 %v1697, 120
        %v1717 = vpop.permute.xlu0 %1716
        %1718 = vrot.lane.b32.xlu0 %v1698, 120
        %v1719 = vpop.permute.xlu0 %1718
        %1720 = vrot.lane.b32.xlu0 %v1699, 120
        %v1721 = vpop.permute.xlu0 %1720
        %1722 = vrot.lane.b32.xlu0 %v1700, 120
        %v1723 = vpop.permute.xlu0 %1722
        %1724 = vrot.lane.b32.xlu0 %v1701, 120
        %v1725 = vpop.permute.xlu0 %1724
        %vm1734 = vcmask 982016
        %v1735 = vsel %vm1734, %v1711, -3e+38
        %v1736 = vsel %vm1734, %v1713, -3e+38
        %v1737 = vsel %vm1734, %v1715, -3e+38
        %v1738 = vsel %vm1734, %v1717, -3e+38
        %v1739 = vsel %vm1734, %v1719, -3e+38
        %v1740 = vsel %vm1734, %v1721, -3e+38
        %v1741 = vsel %vm1734, %v1723, -3e+38
        %v1742 = vsel %vm1734, %v1725, -3e+38
        %v1743 = vmax.f32 %v1694, %v1735
        %v1744 = vmax.f32 %v1695, %v1736
        %v1745 = vmax.f32 %v1696, %v1737
        %v1746 = vmax.f32 %v1697, %v1738
        %v1747 = vmax.f32 %v1698, %v1739
        %v1748 = vmax.f32 %v1699, %v1740
        %v1749 = vmax.f32 %v1700, %v1741
        %v1750 = vmax.f32 %v1701, %v1742
        %v1751 = vld [vmem:[%s8] sm:$0xff]
        %v1752 = vld [vmem:[%s8 + $0x8] sm:$0xff]
        %v1753 = vld [vmem:[%s8 + $0x10] sm:$0xff]
        %v1754 = vld [vmem:[%s8 + $0x18] sm:$0xff]
        %v1755 = vld [vmem:[%s8 + $0x20] sm:$0xff]
        %v1756 = vld [vmem:[%s8 + $0x28] sm:$0xff]
        %v1757 = vld [vmem:[%s8 + $0x30] sm:$0xff]
        %v1758 = vld [vmem:[%s8 + $0x38] sm:$0xff]
        %v1759 = vld [vmem:[%s8 + $0x40] sm:$0xff]
        %v1760 = vld [vmem:[%s8 + $0x48] sm:$0xff]
        %v1761 = vld [vmem:[%s8 + $0x50] sm:$0xff]
        %v1762 = vld [vmem:[%s8 + $0x58] sm:$0xff]
        %v1763 = vld [vmem:[%s8 + $0x60] sm:$0xff]
        %v1764 = vld [vmem:[%s8 + $0x68] sm:$0xff]
        %v1765 = vld [vmem:[%s8 + $0x70] sm:$0xff]
        %v1766 = vld [vmem:[%s8 + $0x78] sm:$0xff]
        %1767 = vmatprep.subr.mxu0 0.0
        %1768 = vmatpush1.msra.mxu0 %v1751
        %1769 = vmatprep.subr.mxu0 0.0
        %1770 = vmatpush1.msra.mxu0 %v1752
        %1771 = vmatprep.subr.mxu0 0.0
        %1772 = vmatpush1.msra.mxu0 %v1753
        %1773 = vmatprep.subr.mxu0 0.0
        %1774 = vmatpush1.msra.mxu0 %v1754
        %1775 = vmatprep.subr.mxu0 0.0
        %1776 = vmatpush1.msra.mxu0 %v1755
        %1777 = vmatprep.subr.mxu0 0.0
        %1778 = vmatpush1.msra.mxu0 %v1756
        %1779 = vmatprep.subr.mxu0 0.0
        %1780 = vmatpush1.msra.mxu0 %v1757
        %1781 = vmatprep.subr.mxu0 0.0
        %1782 = vmatpush1.msra.mxu0 %v1758
        %1783 = vmatprep.subr.mxu0 0.0
        %1784 = vmatpush1.msra.mxu0 %v1759
        %1785 = vmatprep.subr.mxu0 0.0
        %1786 = vmatpush1.msra.mxu0 %v1760
        %1787 = vmatprep.subr.mxu0 0.0
        %1788 = vmatpush1.msra.mxu0 %v1761
        %1789 = vmatprep.subr.mxu0 0.0
        %1790 = vmatpush1.msra.mxu0 %v1762
        %1791 = vmatprep.subr.mxu0 0.0
        %1792 = vmatpush1.msra.mxu0 %v1763
        %1793 = vmatprep.subr.mxu0 0.0
        %1794 = vmatpush1.msra.mxu0 %v1764
        %1795 = vmatprep.subr.mxu0 0.0
        %1796 = vmatpush1.msra.mxu0 %v1765
        %1797 = vmatprep.subr.mxu0 0.0
        %1798 = vmatpush1.msra.mxu0 %v1766
        %1799 = vmatprep.subr.mxu0 0.0
        %1800 = vmatpush1.msra.mxu0 0.0
        %1801 = vmatprep.subr.mxu0 0.0
        %1802 = vmatpush1.msra.mxu0 0.0
        %1803 = vmatprep.subr.mxu0 0.0
        %1804 = vmatpush1.msra.mxu0 0.0
        %1805 = vmatprep.subr.mxu0 0.0
        %1806 = vmatpush1.msra.mxu0 0.0
        %1807 = vmatprep.subr.mxu0 0.0
        %1808 = vmatpush1.msra.mxu0 0.0
        %1809 = vmatprep.subr.mxu0 0.0
        %1810 = vmatpush1.msra.mxu0 0.0
        %1811 = vmatprep.subr.mxu0 0.0
        %1812 = vmatpush1.msra.mxu0 0.0
        %1813 = vmatprep.subr.mxu0 0.0
        %1814 = vmatpush1.msra.mxu0 0.0
        %1815 = vmatprep.subr.mxu0 0.0
        %1816 = vmatpush1.msra.mxu0 0.0
        %1817 = vmatprep.subr.mxu0 0.0
        %1818 = vmatpush1.msra.mxu0 0.0
        %1819 = vmatprep.subr.mxu0 0.0
        %1820 = vmatpush1.msra.mxu0 0.0
        %1821 = vmatprep.subr.mxu0 0.0
        %1822 = vmatpush1.msra.mxu0 0.0
        %1823 = vmatprep.subr.mxu0 0.0
        %1824 = vmatpush1.msra.mxu0 0.0
        %1825 = vmatprep.subr.mxu0 0.0
        %1826 = vmatpush1.msra.mxu0 0.0
        %1827 = vmatprep.subr.mxu0 0.0
        %1828 = vmatpush1.msra.mxu0 0.0
        %1829 = vmatprep.subr.mxu0 0.0
        %1830 = vmatpush1.msra.mxu0 0.0
        %1831 = vmatprep.mubr.f32.mxu0 0.0
        %1832 = vmatmul.mubr.f32.gmra.mrb[0].mxu0 %v1743
        %v1833 = vpop.f32.mrb[0].mxu0
        %v1834 = vadd.f32 0.0, %v1833
        %v1835 = vpop.f32.mrb[0].mxu0
        %1836 = vmatprep.mubr.f32.mxu0 0.0
        %1837 = vmatmul.mubr.f32.gmra.mrb[0].mxu0 %v1744
        %v1838 = vpop.f32.mrb[0].mxu0
        %v1839 = vadd.f32 0.0, %v1838
        %v1840 = vpop.f32.mrb[0].mxu0
        %1841 = vmatprep.mubr.f32.mxu0 0.0
        %1842 = vmatmul.mubr.f32.gmra.mrb[0].mxu0 %v1745
        %v1843 = vpop.f32.mrb[0].mxu0
        %v1844 = vadd.f32 0.0, %v1843
        %v1845 = vpop.f32.mrb[0].mxu0
        %1846 = vmatprep.mubr.f32.mxu0 0.0
        %1847 = vmatmul.mubr.f32.gmra.mrb[0].mxu0 %v1746
        %v1848 = vpop.f32.mrb[0].mxu0
        %v1849 = vadd.f32 0.0, %v1848
        %v1850 = vpop.f32.mrb[0].mxu0
        %1851 = vmatprep.mubr.f32.mxu0 0.0
        %1852 = vmatmul.mubr.f32.gmra.mrb[0].mxu0 %v1747
        %v1853 = vpop.f32.mrb[0].mxu0
        %v1854 = vadd.f32 0.0, %v1853
        %v1855 = vpop.f32.mrb[0].mxu0
        %1856 = vmatprep.mubr.f32.mxu0 0.0
        %1857 = vmatmul.mubr.f32.gmra.mrb[0].mxu0 %v1748
        %v1858 = vpop.f32.mrb[0].mxu0
        %v1859 = vadd.f32 0.0, %v1858
        %v1860 = vpop.f32.mrb[0].mxu0
        %1861 = vmatprep.mubr.f32.mxu0 0.0
        %1862 = vmatmul.mubr.f32.gmra.mrb[0].mxu0 %v1749
        %v1863 = vpop.f32.mrb[0].mxu0
        %v1864 = vadd.f32 0.0, %v1863
        %v1865 = vpop.f32.mrb[0].mxu0
        %1866 = vmatprep.mubr.f32.mxu0 0.0
        %1867 = vmatmul.mubr.f32.gmra.mrb[0].mxu0 %v1750
        %v1868 = vpop.f32.mrb[0].mxu0
        %v1869 = vadd.f32 0.0, %v1868
        %v1870 = vpop.f32.mrb[0].mxu0
        %1871 = vdwg.mxu0
        %v1872 = vld [vmem:[%s3] sm:$0xf]
        %v1873 = vld [vmem:[%s4] sm:$0xf]
        %1875 = vset.pattern.permute.xlu0 0
        %1876 = vperm.xlu0 %1875, %v1873
        %v1877 = vpop.permute.xlu0 %1876
        %v1880 = vsel %vm513, %v1872, 0
        %1882 = vmatprep.subr.mxu0 0.0
        %1883 = vmatpush1.msra.mxu0 %v1518
        %1884 = vmatprep.subr.mxu0 0.0
        %1885 = vmatpush1.msra.mxu0 %v1523
        %1886 = vmatprep.subr.mxu0 0.0
        %1887 = vmatpush1.msra.mxu0 %v1528
        %1888 = vmatprep.subr.mxu0 0.0
        %1889 = vmatpush1.msra.mxu0 %v1533
        %1890 = vmatprep.subr.mxu0 0.0
        %1891 = vmatpush1.msra.mxu0 %v1538
        %1892 = vmatprep.subr.mxu0 0.0
        %1893 = vmatpush1.msra.mxu0 %v1543
        %1894 = vmatprep.subr.mxu0 0.0
        %1895 = vmatpush1.msra.mxu0 %v1548
        %1896 = vmatprep.subr.mxu0 0.0
        %1897 = vmatpush1.msra.mxu0 %v1553
        %1898 = vmatprep.subr.mxu0 0.0
        %1899 = vmatpush1.msra.mxu0 0.0
        %1900 = vmatprep.subr.mxu0 0.0
        %1901 = vmatpush1.msra.mxu0 0.0
        %1902 = vmatprep.subr.mxu0 0.0
        %1903 = vmatpush1.msra.mxu0 0.0
        %1904 = vmatprep.subr.mxu0 0.0
        %1905 = vmatpush1.msra.mxu0 0.0
        %1906 = vmatprep.subr.mxu0 0.0
        %1907 = vmatpush1.msra.mxu0 0.0
        %1908 = vmatprep.subr.mxu0 0.0
        %1909 = vmatpush1.msra.mxu0 0.0
        %1910 = vmatprep.subr.mxu0 0.0
        %1911 = vmatpush1.msra.mxu0 0.0
        %1912 = vmatprep.subr.mxu0 0.0
        %1913 = vmatpush1.msra.mxu0 0.0
        %1914 = vmatprep.subr.mxu0 0.0
        %1915 = vmatpush1.msra.mxu0 0.0
        %1916 = vmatprep.subr.mxu0 0.0
        %1917 = vmatpush1.msra.mxu0 0.0
        %1918 = vmatprep.subr.mxu0 0.0
        %1919 = vmatpush1.msra.mxu0 0.0
        %1920 = vmatprep.subr.mxu0 0.0
        %1921 = vmatpush1.msra.mxu0 0.0
        %1922 = vmatprep.subr.mxu0 0.0
        %1923 = vmatpush1.msra.mxu0 0.0
        %1924 = vmatprep.subr.mxu0 0.0
        %1925 = vmatpush1.msra.mxu0 0.0
        %1926 = vmatprep.subr.mxu0 0.0
        %1927 = vmatpush1.msra.mxu0 0.0
        %1928 = vmatprep.subr.mxu0 0.0
        %1929 = vmatpush1.msra.mxu0 0.0
        %1930 = vmatprep.subr.mxu0 0.0
        %1931 = vmatpush1.msra.mxu0 0.0
        %1932 = vmatprep.subr.mxu0 0.0
        %1933 = vmatpush1.msra.mxu0 0.0
        %1934 = vmatprep.subr.mxu0 0.0
        %1935 = vmatpush1.msra.mxu0 0.0
        %1936 = vmatprep.subr.mxu0 0.0
        %1937 = vmatpush1.msra.mxu0 0.0
        %1938 = vmatprep.subr.mxu0 0.0
        %1939 = vmatpush1.msra.mxu0 0.0
        %1940 = vmatprep.subr.mxu0 0.0
        %1941 = vmatpush1.msra.mxu0 0.0
        %1942 = vmatprep.subr.mxu0 0.0
        %1943 = vmatpush1.msra.mxu0 0.0
        %1944 = vmatprep.subr.mxu0 0.0
        %1945 = vmatpush1.msra.mxu0 0.0
        %1946 = vmatprep.mubr.f32.mxu0 0.0
        %1947 = vmatmul.mubr.f32.gmra.mrb[0].mxu0 %v1880
        %v1948 = vpop.f32.mrb[0].mxu0
        %v1949 = vadd.f32 %v1877, %v1948
        %v1950 = vpop.f32.mrb[0].mxu0
        %1951 = vdwg.mxu0
        %v1952 = vmax.f32 %v1949, 0.0
        %1953 = vmatprep.subr.mxu0 0.0
        %1954 = vmatpush1.msra.mxu0 %v1834
        %1955 = vmatprep.subr.mxu0 0.0
        %1956 = vmatpush1.msra.mxu0 %v1839
        %1957 = vmatprep.subr.mxu0 0.0
        %1958 = vmatpush1.msra.mxu0 %v1844
        %1959 = vmatprep.subr.mxu0 0.0
        %1960 = vmatpush1.msra.mxu0 %v1849
        %1961 = vmatprep.subr.mxu0 0.0
        %1962 = vmatpush1.msra.mxu0 %v1854
        %1963 = vmatprep.subr.mxu0 0.0
        %1964 = vmatpush1.msra.mxu0 %v1859
        %1965 = vmatprep.subr.mxu0 0.0
        %1966 = vmatpush1.msra.mxu0 %v1864
        %1967 = vmatprep.subr.mxu0 0.0
        %1968 = vmatpush1.msra.mxu0 %v1869
        %1969 = vmatprep.subr.mxu0 0.0
        %1970 = vmatpush1.msra.mxu0 0.0
        %1971 = vmatprep.subr.mxu0 0.0
        %1972 = vmatpush1.msra.mxu0 0.0
        %1973 = vmatprep.subr.mxu0 0.0
        %1974 = vmatpush1.msra.mxu0 0.0
        %1975 = vmatprep.subr.mxu0 0.0
        %1976 = vmatpush1.msra.mxu0 0.0
        %1977 = vmatprep.subr.mxu0 0.0
        %1978 = vmatpush1.msra.mxu0 0.0
        %1979 = vmatprep.subr.mxu0 0.0
        %1980 = vmatpush1.msra.mxu0 0.0
        %1981 = vmatprep.subr.mxu0 0.0
        %1982 = vmatpush1.msra.mxu0 0.0
        %1983 = vmatprep.subr.mxu0 0.0
        %1984 = vmatpush1.msra.mxu0 0.0
        %1985 = vmatprep.subr.mxu0 0.0
        %1986 = vmatpush1.msra.mxu0 0.0
        %1987 = vmatprep.subr.mxu0 0.0
        %1988 = vmatpush1.msra.mxu0 0.0
        %1989 = vmatprep.subr.mxu0 0.0
        %1990 = vmatpush1.msra.mxu0 0.0
        %1991 = vmatprep.subr.mxu0 0.0
        %1992 = vmatpush1.msra.mxu0 0.0
        %1993 = vmatprep.subr.mxu0 0.0
        %1994 = vmatpush1.msra.mxu0 0.0
        %1995 = vmatprep.subr.mxu0 0.0
        %1996 = vmatpush1.msra.mxu0 0.0
        %1997 = vmatprep.subr.mxu0 0.0
        %1998 = vmatpush1.msra.mxu0 0.0
        %1999 = vmatprep.subr.mxu0 0.0
        %2000 = vmatpush1.msra.mxu0 0.0
        %2001 = vmatprep.subr.mxu0 0.0
        %2002 = vmatpush1.msra.mxu0 0.0
        %2003 = vmatprep.subr.mxu0 0.0
        %2004 = vmatpush1.msra.mxu0 0.0
        %2005 = vmatprep.subr.mxu0 0.0
        %2006 = vmatpush1.msra.mxu0 0.0
        %2007 = vmatprep.subr.mxu0 0.0
        %2008 = vmatpush1.msra.mxu0 0.0
        %2009 = vmatprep.subr.mxu0 0.0
        %2010 = vmatpush1.msra.mxu0 0.0
        %2011 = vmatprep.subr.mxu0 0.0
        %2012 = vmatpush1.msra.mxu0 0.0
        %2013 = vmatprep.subr.mxu0 0.0
        %2014 = vmatpush1.msra.mxu0 0.0
        %2015 = vmatprep.subr.mxu0 0.0
        %2016 = vmatpush1.msra.mxu0 0.0
        %2017 = vmatprep.mubr.f32.mxu0 0.0
        %2018 = vmatmul.mubr.f32.gmra.mrb[0].mxu0 %v1880
        %v2019 = vpop.f32.mrb[0].mxu0
        %v2020 = vadd.f32 %v1877, %v2019
        %v2021 = vpop.f32.mrb[0].mxu0
        %2022 = vdwg.mxu0
        %v2023 = vmax.f32 %v2020, 0.0
        %v2024 = vld [vmem:[%s5] sm:$0xff]
        %v2025 = vld [vmem:[%s5 + $0x8] sm:$0xff]
        %v2026 = vld [vmem:[%s5 + $0x10] sm:$0xff]
        %v2027 = vld [vmem:[%s5 + $0x18] sm:$0xff]
        %v2028 = vld [vmem:[%s5 + $0x20] sm:$0xff]
        %v2029 = vld [vmem:[%s5 + $0x28] sm:$0xff]
        %v2030 = vld [vmem:[%s5 + $0x30] sm:$0xff]
        %v2031 = vld [vmem:[%s5 + $0x38] sm:$0xff]
        %v2032 = vadd.f32 %v1952, %v2023
        %v2033 = vld [vmem:[%s6] sm:$0xff]
        %v2034 = vld [vmem:[%s6 + $0x8] sm:$0xff]
        %v2035 = vld [vmem:[%s6 + $0x10] sm:$0xff]
        %v2036 = vld [vmem:[%s6 + $0x18] sm:$0xff]
        %v2037 = vld [vmem:[%s6 + $0x20] sm:$0xff]
        %v2038 = vld [vmem:[%s6 + $0x28] sm:$0xff]
        %v2039 = vld [vmem:[%s6 + $0x30] sm:$0xff]
        %v2040 = vld [vmem:[%s6 + $0x38] sm:$0xff]
        %v2041 = vmul.f32 %v2033, 2.0
        %v2042 = vmul.f32 %v2034, 2.0
        %v2043 = vmul.f32 %v2035, 2.0
        %v2044 = vmul.f32 %v2036, 2.0
        %v2045 = vmul.f32 %v2037, 2.0
        %v2046 = vmul.f32 %v2038, 2.0
        %v2047 = vmul.f32 %v2039, 2.0
        %v2048 = vmul.f32 %v2040, 2.0
        %2050 = vset.pattern.permute.xlu0 0
        %2051 = vperm.xlu0 %2050, %v2041
        %v2052 = vpop.permute.xlu0 %2051
        %2055 = vset.pattern.permute.xlu0 0
        %2056 = vperm.xlu0 %2055, %v2042
        %v2057 = vpop.permute.xlu0 %2056
        %2060 = vset.pattern.permute.xlu0 0
        %2061 = vperm.xlu0 %2060, %v2043
        %v2062 = vpop.permute.xlu0 %2061
        %2065 = vset.pattern.permute.xlu0 0
        %2066 = vperm.xlu0 %2065, %v2044
        %v2067 = vpop.permute.xlu0 %2066
        %2070 = vset.pattern.permute.xlu0 0
        %2071 = vperm.xlu0 %2070, %v2045
        %v2072 = vpop.permute.xlu0 %2071
        %2075 = vset.pattern.permute.xlu0 0
        %2076 = vperm.xlu0 %2075, %v2046
        %v2077 = vpop.permute.xlu0 %2076
        %2080 = vset.pattern.permute.xlu0 0
        %2081 = vperm.xlu0 %2080, %v2047
        %v2082 = vpop.permute.xlu0 %2081
        %2085 = vset.pattern.permute.xlu0 0
        %2086 = vperm.xlu0 %2085, %v2048
        %v2087 = vpop.permute.xlu0 %2086
        %vm2089 = vcmask 31744
        %v2091 = vsel %vm2089, %v2024, 0
        %v2094 = vsel %vm2089, %v2025, 0
        %v2097 = vsel %vm2089, %v2026, 0
        %v2100 = vsel %vm2089, %v2027, 0
        %v2103 = vsel %vm2089, %v2028, 0
        %v2106 = vsel %vm2089, %v2029, 0
        %v2109 = vsel %vm2089, %v2030, 0
        %v2112 = vsel %vm2089, %v2031, 0
        %vm2114 = vcmask 1043456
        %v2116 = vsel %vm2114, %v2032, 0
        %2118 = vmatprep.subr.mxu0 0.0
        %2119 = vmatpush1.msra.mxu0 %v2116
        %2120 = vmatprep.subr.mxu0 0.0
        %2121 = vmatpush1.msra.mxu0 0.0
        %2122 = vmatprep.subr.mxu0 0.0
        %2123 = vmatpush1.msra.mxu0 0.0
        %2124 = vmatprep.subr.mxu0 0.0
        %2125 = vmatpush1.msra.mxu0 0.0
        %2126 = vmatprep.subr.mxu0 0.0
        %2127 = vmatpush1.msra.mxu0 0.0
        %2128 = vmatprep.subr.mxu0 0.0
        %2129 = vmatpush1.msra.mxu0 0.0
        %2130 = vmatprep.subr.mxu0 0.0
        %2131 = vmatpush1.msra.mxu0 0.0
        %2132 = vmatprep.subr.mxu0 0.0
        %2133 = vmatpush1.msra.mxu0 0.0
        %2134 = vmatprep.subr.mxu0 0.0
        %2135 = vmatpush1.msra.mxu0 0.0
        %2136 = vmatprep.subr.mxu0 0.0
        %2137 = vmatpush1.msra.mxu0 0.0
        %2138 = vmatprep.subr.mxu0 0.0
        %2139 = vmatpush1.msra.mxu0 0.0
        %2140 = vmatprep.subr.mxu0 0.0
        %2141 = vmatpush1.msra.mxu0 0.0
        %2142 = vmatprep.subr.mxu0 0.0
        %2143 = vmatpush1.msra.mxu0 0.0
        %2144 = vmatprep.subr.mxu0 0.0
        %2145 = vmatpush1.msra.mxu0 0.0
        %2146 = vmatprep.subr.mxu0 0.0
        %2147 = vmatpush1.msra.mxu0 0.0
        %2148 = vmatprep.subr.mxu0 0.0
        %2149 = vmatpush1.msra.mxu0 0.0
        %2150 = vmatprep.subr.mxu0 0.0
        %2151 = vmatpush1.msra.mxu0 0.0
        %2152 = vmatprep.subr.mxu0 0.0
        %2153 = vmatpush1.msra.mxu0 0.0
        %2154 = vmatprep.subr.mxu0 0.0
        %2155 = vmatpush1.msra.mxu0 0.0
        %2156 = vmatprep.subr.mxu0 0.0
        %2157 = vmatpush1.msra.mxu0 0.0
        %2158 = vmatprep.subr.mxu0 0.0
        %2159 = vmatpush1.msra.mxu0 0.0
        %2160 = vmatprep.subr.mxu0 0.0
        %2161 = vmatpush1.msra.mxu0 0.0
        %2162 = vmatprep.subr.mxu0 0.0
        %2163 = vmatpush1.msra.mxu0 0.0
        %2164 = vmatprep.subr.mxu0 0.0
        %2165 = vmatpush1.msra.mxu0 0.0
        %2166 = vmatprep.subr.mxu0 0.0
        %2167 = vmatpush1.msra.mxu0 0.0
        %2168 = vmatprep.subr.mxu0 0.0
        %2169 = vmatpush1.msra.mxu0 0.0
        %2170 = vmatprep.subr.mxu0 0.0
        %2171 = vmatpush1.msra.mxu0 0.0
        %2172 = vmatprep.subr.mxu0 0.0
        %2173 = vmatpush1.msra.mxu0 0.0
        %2174 = vmatprep.subr.mxu0 0.0
        %2175 = vmatpush1.msra.mxu0 0.0
        %2176 = vmatprep.subr.mxu0 0.0
        %2177 = vmatpush1.msra.mxu0 0.0
        %2178 = vmatprep.subr.mxu0 0.0
        %2179 = vmatpush1.msra.mxu0 0.0
        %2180 = vmatprep.subr.mxu0 0.0
        %2181 = vmatpush1.msra.mxu0 0.0
        %2182 = vmatprep.mubr.f32.mxu0 0.0
        %2183 = vmatmul.mubr.f32.gmra.mrb[0].mxu0 %v2091
        %v2184 = vpop.f32.mrb[0].mxu0
        %v2185 = vadd.f32 %v2052, %v2184
        %v2186 = vpop.f32.mrb[0].mxu0
        %2187 = vmatprep.mubr.f32.mxu0 0.0
        %2188 = vmatmul.mubr.f32.gmra.mrb[0].mxu0 %v2094
        %v2189 = vpop.f32.mrb[0].mxu0
        %v2190 = vadd.f32 %v2057, %v2189
        %v2191 = vpop.f32.mrb[0].mxu0
        %2192 = vmatprep.mubr.f32.mxu0 0.0
        %2193 = vmatmul.mubr.f32.gmra.mrb[0].mxu0 %v2097
        %v2194 = vpop.f32.mrb[0].mxu0
        %v2195 = vadd.f32 %v2062, %v2194
        %v2196 = vpop.f32.mrb[0].mxu0
        %2197 = vmatprep.mubr.f32.mxu0 0.0
        %2198 = vmatmul.mubr.f32.gmra.mrb[0].mxu0 %v2100
        %v2199 = vpop.f32.mrb[0].mxu0
        %v2200 = vadd.f32 %v2067, %v2199
        %v2201 = vpop.f32.mrb[0].mxu0
        %2202 = vmatprep.mubr.f32.mxu0 0.0
        %2203 = vmatmul.mubr.f32.gmra.mrb[0].mxu0 %v2103
        %v2204 = vpop.f32.mrb[0].mxu0
        %v2205 = vadd.f32 %v2072, %v2204
        %v2206 = vpop.f32.mrb[0].mxu0
        %2207 = vmatprep.mubr.f32.mxu0 0.0
        %2208 = vmatmul.mubr.f32.gmra.mrb[0].mxu0 %v2106
        %v2209 = vpop.f32.mrb[0].mxu0
        %v2210 = vadd.f32 %v2077, %v2209
        %v2211 = vpop.f32.mrb[0].mxu0
        %2212 = vmatprep.mubr.f32.mxu0 0.0
        %2213 = vmatmul.mubr.f32.gmra.mrb[0].mxu0 %v2109
        %v2214 = vpop.f32.mrb[0].mxu0
        %v2215 = vadd.f32 %v2082, %v2214
        %v2216 = vpop.f32.mrb[0].mxu0
        %2217 = vmatprep.mubr.f32.mxu0 0.0
        %2218 = vmatmul.mubr.f32.gmra.mrb[0].mxu0 %v2112
        %v2219 = vpop.f32.mrb[0].mxu0
        %v2220 = vadd.f32 %v2087, %v2219
        %v2221 = vpop.f32.mrb[0].mxu0
        %2222 = vdwg.mxu0
        %v2223 = vxor.u32 %v2185, 2147483648
        %v2224 = vxor.u32 %v2190, 2147483648
        %v2225 = vxor.u32 %v2195, 2147483648
        %v2226 = vxor.u32 %v2200, 2147483648
        %v2227 = vxor.u32 %v2205, 2147483648
        %v2228 = vxor.u32 %v2210, 2147483648
        %v2229 = vxor.u32 %v2215, 2147483648
        %v2230 = vxor.u32 %v2220, 2147483648
        %v2231 = vmul.f32 %v2223, 1.442695
        %v2232 = vpow.pop %v2231
        %v2233 = vmul.f32 %v2224, 1.442695
        %v2234 = vpow.pop %v2233
        %v2235 = vmul.f32 %v2225, 1.442695
        %v2236 = vpow.pop %v2235
        %v2237 = vmul.f32 %v2226, 1.442695
        %v2238 = vpow.pop %v2237
        %v2239 = vmul.f32 %v2227, 1.442695
        %v2240 = vpow.pop %v2239
        %v2241 = vmul.f32 %v2228, 1.442695
        %v2242 = vpow.pop %v2241
        %v2243 = vmul.f32 %v2229, 1.442695
        %v2244 = vpow.pop %v2243
        %v2245 = vmul.f32 %v2230, 1.442695
        %v2246 = vpow.pop %v2245
        %v2247 = vadd.f32 %v2232, 1.0
        %v2248 = vadd.f32 %v2234, 1.0
        %v2249 = vadd.f32 %v2236, 1.0
        %v2250 = vadd.f32 %v2238, 1.0
        %v2251 = vadd.f32 %v2240, 1.0
        %v2252 = vadd.f32 %v2242, 1.0
        %v2253 = vadd.f32 %v2244, 1.0
        %v2254 = vadd.f32 %v2246, 1.0
        %v2255 = vrcp.pop %v2247
        %v2256 = vmul.f32 1.0, %v2255
        %v2257 = vrcp.pop %v2248
        %v2258 = vmul.f32 1.0, %v2257
        %v2259 = vrcp.pop %v2249
        %v2260 = vmul.f32 1.0, %v2259
        %v2261 = vrcp.pop %v2250
        %v2262 = vmul.f32 1.0, %v2261
        %v2263 = vrcp.pop %v2251
        %v2264 = vmul.f32 1.0, %v2263
        %v2265 = vrcp.pop %v2252
        %v2266 = vmul.f32 1.0, %v2265
        %v2267 = vrcp.pop %v2253
        %v2268 = vmul.f32 1.0, %v2267
        %v2269 = vrcp.pop %v2254
        %v2270 = vmul.f32 1.0, %v2269
        %v2271 = vld [vmem:[%s9] sm:$0xff]
        %vm2272 = vcmask 64512
        %v2274 = vsel %vm2272, %v2256, 0
        %v2277 = vsel %vm2272, %v2258, 0
        %v2280 = vsel %vm2272, %v2260, 0
        %v2283 = vsel %vm2272, %v2262, 0
        %v2286 = vsel %vm2272, %v2264, 0
        %v2289 = vsel %vm2272, %v2266, 0
        %v2292 = vsel %vm2272, %v2268, 0
        %v2295 = vsel %vm2272, %v2270, 0
        %2297 = vmatprep.subr.mxu0 0.0
        %2298 = vmatpush1.msra.mxu0 %v2271
        %2299 = vmatprep.subr.mxu0 0.0
        %2300 = vmatpush1.msra.mxu0 0.0
        %2301 = vmatprep.subr.mxu0 0.0
        %2302 = vmatpush1.msra.mxu0 0.0
        %2303 = vmatprep.subr.mxu0 0.0
        %2304 = vmatpush1.msra.mxu0 0.0
        %2305 = vmatprep.subr.mxu0 0.0
        %2306 = vmatpush1.msra.mxu0 0.0
        %2307 = vmatprep.subr.mxu0 0.0
        %2308 = vmatpush1.msra.mxu0 0.0
        %2309 = vmatprep.subr.mxu0 0.0
        %2310 = vmatpush1.msra.mxu0 0.0
        %2311 = vmatprep.subr.mxu0 0.0
        %2312 = vmatpush1.msra.mxu0 0.0
        %2313 = vmatprep.subr.mxu0 0.0
        %2314 = vmatpush1.msra.mxu0 0.0
        %2315 = vmatprep.subr.mxu0 0.0
        %2316 = vmatpush1.msra.mxu0 0.0
        %2317 = vmatprep.subr.mxu0 0.0
        %2318 = vmatpush1.msra.mxu0 0.0
        %2319 = vmatprep.subr.mxu0 0.0
        %2320 = vmatpush1.msra.mxu0 0.0
        %2321 = vmatprep.subr.mxu0 0.0
        %2322 = vmatpush1.msra.mxu0 0.0
        %2323 = vmatprep.subr.mxu0 0.0
        %2324 = vmatpush1.msra.mxu0 0.0
        %2325 = vmatprep.subr.mxu0 0.0
        %2326 = vmatpush1.msra.mxu0 0.0
        %2327 = vmatprep.subr.mxu0 0.0
        %2328 = vmatpush1.msra.mxu0 0.0
        %2329 = vmatprep.subr.mxu0 0.0
        %2330 = vmatpush1.msra.mxu0 0.0
        %2331 = vmatprep.subr.mxu0 0.0
        %2332 = vmatpush1.msra.mxu0 0.0
        %2333 = vmatprep.subr.mxu0 0.0
        %2334 = vmatpush1.msra.mxu0 0.0
        %2335 = vmatprep.subr.mxu0 0.0
        %2336 = vmatpush1.msra.mxu0 0.0
        %2337 = vmatprep.subr.mxu0 0.0
        %2338 = vmatpush1.msra.mxu0 0.0
        %2339 = vmatprep.subr.mxu0 0.0
        %2340 = vmatpush1.msra.mxu0 0.0
        %2341 = vmatprep.subr.mxu0 0.0
        %2342 = vmatpush1.msra.mxu0 0.0
        %2343 = vmatprep.subr.mxu0 0.0
        %2344 = vmatpush1.msra.mxu0 0.0
        %2345 = vmatprep.subr.mxu0 0.0
        %2346 = vmatpush1.msra.mxu0 0.0
        %2347 = vmatprep.subr.mxu0 0.0
        %2348 = vmatpush1.msra.mxu0 0.0
        %2349 = vmatprep.subr.mxu0 0.0
        %2350 = vmatpush1.msra.mxu0 0.0
        %2351 = vmatprep.subr.mxu0 0.0
        %2352 = vmatpush1.msra.mxu0 0.0
        %2353 = vmatprep.subr.mxu0 0.0
        %2354 = vmatpush1.msra.mxu0 0.0
        %2355 = vmatprep.subr.mxu0 0.0
        %2356 = vmatpush1.msra.mxu0 0.0
        %2357 = vmatprep.subr.mxu0 0.0
        %2358 = vmatpush1.msra.mxu0 0.0
        %2359 = vmatprep.subr.mxu0 0.0
        %2360 = vmatpush1.msra.mxu0 0.0
        %2361 = vmatprep.mubr.f32.mxu0 0.0
        %2362 = vmatmul.mubr.f32.gmra.mrb[0].mxu0 %v2274
        %v2363 = vpop.f32.mrb[0].mxu0
        %v2364 = vadd.f32 0.0, %v2363
        %v2365 = vpop.f32.mrb[0].mxu0
        %2366 = vmatprep.mubr.f32.mxu0 0.0
        %2367 = vmatmul.mubr.f32.gmra.mrb[0].mxu0 %v2277
        %v2368 = vpop.f32.mrb[0].mxu0
        %v2369 = vadd.f32 0.0, %v2368
        %v2370 = vpop.f32.mrb[0].mxu0
        %2371 = vmatprep.mubr.f32.mxu0 0.0
        %2372 = vmatmul.mubr.f32.gmra.mrb[0].mxu0 %v2280
        %v2373 = vpop.f32.mrb[0].mxu0
        %v2374 = vadd.f32 0.0, %v2373
        %v2375 = vpop.f32.mrb[0].mxu0
        %2376 = vmatprep.mubr.f32.mxu0 0.0
        %2377 = vmatmul.mubr.f32.gmra.mrb[0].mxu0 %v2283
        %v2378 = vpop.f32.mrb[0].mxu0
        %v2379 = vadd.f32 0.0, %v2378
        %v2380 = vpop.f32.mrb[0].mxu0
        %2381 = vmatprep.mubr.f32.mxu0 0.0
        %2382 = vmatmul.mubr.f32.gmra.mrb[0].mxu0 %v2286
        %v2383 = vpop.f32.mrb[0].mxu0
        %v2384 = vadd.f32 0.0, %v2383
        %v2385 = vpop.f32.mrb[0].mxu0
        %2386 = vmatprep.mubr.f32.mxu0 0.0
        %2387 = vmatmul.mubr.f32.gmra.mrb[0].mxu0 %v2289
        %v2388 = vpop.f32.mrb[0].mxu0
        %v2389 = vadd.f32 0.0, %v2388
        %v2390 = vpop.f32.mrb[0].mxu0
        %2391 = vmatprep.mubr.f32.mxu0 0.0
        %2392 = vmatmul.mubr.f32.gmra.mrb[0].mxu0 %v2292
        %v2393 = vpop.f32.mrb[0].mxu0
        %v2394 = vadd.f32 0.0, %v2393
        %v2395 = vpop.f32.mrb[0].mxu0
        %2396 = vmatprep.mubr.f32.mxu0 0.0
        %2397 = vmatmul.mubr.f32.gmra.mrb[0].mxu0 %v2295
        %v2398 = vpop.f32.mrb[0].mxu0
        %v2399 = vadd.f32 0.0, %v2398
        %v2400 = vpop.f32.mrb[0].mxu0
        %2401 = vdwg.mxu0
        %v2402 = vmul.f32 %v2364, %v1427
        %v2403 = vmul.f32 %v2369, %v1428
        %v2404 = vmul.f32 %v2374, %v1429
        %v2405 = vmul.f32 %v2379, %v1430
        %v2406 = vmul.f32 %v2384, %v1431
        %v2407 = vmul.f32 %v2389, %v1432
        %v2408 = vmul.f32 %v2394, %v1433
        %v2409 = vmul.f32 %v2399, %v1434
        %v2410 = vadd.f32 %v2402, %v398
        %v2411 = vadd.f32 %v2403, %v399
        %v2412 = vadd.f32 %v2404, %v400
        %v2413 = vadd.f32 %v2405, %v401
        %v2414 = vadd.f32 %v2406, %v402
        %v2415 = vadd.f32 %v2407, %v403
        %v2416 = vadd.f32 %v2408, %v404
        %v2417 = vadd.f32 %v2409, %v405
        %v2418 = vmax.f32 %v2410, 0.0
        %v2419 = vmax.f32 %v2411, 0.0
        %v2420 = vmax.f32 %v2412, 0.0
        %v2421 = vmax.f32 %v2413, 0.0
        %v2422 = vmax.f32 %v2414, 0.0
        %v2423 = vmax.f32 %v2415, 0.0
        %v2424 = vmax.f32 %v2416, 0.0
        %v2425 = vmax.f32 %v2417, 0.0
        %2426 = vst [vmem:[%s377] sm:$0xff] %v2418
        %2427 = vst [vmem:[%s377 + $0x8] sm:$0xff] %v2419
        %2428 = vst [vmem:[%s377 + $0x10] sm:$0xff] %v2420
        %2429 = vst [vmem:[%s377 + $0x18] sm:$0xff] %v2421
        %2430 = vst [vmem:[%s377 + $0x20] sm:$0xff] %v2422
        %2431 = vst [vmem:[%s377 + $0x28] sm:$0xff] %v2423
        %2432 = vst [vmem:[%s377 + $0x30] sm:$0xff] %v2424
        %2433 = vst [vmem:[%s377 + $0x38] sm:$0xff] %v2425
        %s2434 = sand.u32 %s250, 1
        %s2435 = scalar_lea.sflag [#allocation4], %s2434
        %s2436 = sand.u32 %s250, 1
        %s2437 = smul.addr %s2436, 64
        %s2438 = scalar_lea.vmem [#allocation5], %s2437
        // Predicated region
        $region65: #{tpu_custom_call.1} parent=59 // pred_check
          %p2439 = pneg %p260
        $region66: #{tpu_custom_call.1} parent=59 // pred_check_branch
          %2441 = sbr.rel (%p2439) target = $region68
        $region67: #{tpu_custom_call.1} parent=59 // pred_region
          %s2443 = ssub.s32 1024, 1024
          %2444 = vsyncadd %s2435, %s2443
          %s2445 = smul.addr %s27, 8
          %s2446 = smul.addr %s2445, 128
          %s2447 = scalar_lea.hbm %s10, %s2446
          %s2448 = sshll.u32 %s2438, 4
          %s2449 = int_to_ptr.vmem [resolvable:$true] %s2448
          %2454 = dma.vmem_to_hbm [thread:$0]  %s2449, 1024, %s2447, %s2435, 128, 128, 8
        $region68: #{tpu_custom_call.1} parent=59 // pred_fallthru
          _
      $region60: #{tpu_custom_call.1} parent=5 // pred_fallthru
        _
      %p2455 = scmp.le.s32.totalorder 2, %s22
      // Predicated region
      $region69: #{tpu_custom_call.1} parent=5 // pred_check
        %p2456 = pneg %p2455
      $region70: #{tpu_custom_call.1} parent=5 // pred_check_branch
        %2458 = sbr.rel (%p2456) target = $region72
      $region71: #{tpu_custom_call.1} parent=5 // pred_region
        %s2459 = ssub.s32 %s22, 2
        // Predicated region
        $region73: #{tpu_custom_call.1} parent=71 // pred_check
          %p2460 = pneg %p266
        $region74: #{tpu_custom_call.1} parent=71 // pred_check_branch
          %2462 = sbr.rel (%p2460) target = $region76
        $region75: #{tpu_custom_call.1} parent=71 // pred_region
          %s2463 = sand.u32 %s251, 1
          %s2464 = scalar_lea.sflag [#allocation4], %s2463
          %s2465 = sand.u32 %s251, 1
          %s2466 = smul.addr %s2465, 64
          %s2467 = scalar_lea.vmem [#allocation5], %s2466
          %2468 = dma.done %s2464, 1024
        $region76: #{tpu_custom_call.1} parent=71 // pred_fallthru
          _
      $region72: #{tpu_custom_call.1} parent=5 // pred_fallthru
        _
    $region6: #{tpu_custom_call.1} parent=1 // loop_footer
      %s26 = sadd.s32 1, %s22
    $region7: #{tpu_custom_call.1} parent=1 // loop_footer_branch
      %21 = sbr.rel target = $region3
    $region8: #{tpu_custom_call.1} parent=1 // loop_exit
      _
    %2469 = vsyncpa [#allocation3], 1
    %s2470 = scalar_lea.sflag [#allocation3], 1
    %2471 = vsyncpa %s2470, 1
    %2472 = vsyncpa [#allocation4], 1
    %s2473 = scalar_lea.sflag [#allocation4], 1
    %2474 = vsyncpa %s2473, 1

</llo_original>
